<compile_context>
chip_gen: v6e
topology: v6e:2x2x1
jax: 0.10.0
libtpu: 0.0.40
codegen_flags: <defaults>
</compile_context>

<pallas_src>
import numpy as np
import jax
import jax.numpy as jnp
from jax.experimental import pallas as pl
from jax.experimental.pallas import tpu as pltpu

LEVELS = 3
_HI = jax.lax.Precision.HIGHEST


# ----------------------- constant spatial operators -------------------------

def _pool_upsample_mats(hl, wl):
    """2x2 average-pool / nearest-upsample as matrices on flattened pixels."""
    p_fine = hl * wl
    d = np.zeros((p_fine, (hl // 2) * (wl // 2)), np.float32)
    for hh in range(hl):
        for ww in range(wl):
            d[hh * wl + ww, (hh // 2) * (wl // 2) + (ww // 2)] = 0.25
    u = (d.T > 0).astype(np.float32)          # (P_coarse, P_fine), nearest
    return jnp.asarray(d), jnp.asarray(u)


# ------------------------------ model params --------------------------------

def make_params(key, c_in, feat, h, w, levels=LEVELS):
    keys = jax.random.split(key, 1 + 2 * levels)
    return {
        "w_embed": jax.random.normal(keys[0], (c_in, feat), jnp.float32) * 0.5,
        "w_flow": [jax.random.normal(keys[1 + l], (feat, feat), jnp.float32) * 0.5
                   for l in range(levels)],
        # feat_mean templates, PyTorch-style NCHW (1, F, H_l, W_l)
        "feat_mean": [jax.random.normal(keys[1 + levels + l],
                                        (1, feat, h >> l, w >> l), jnp.float32)
                      for l in range(levels)],
    }


# ----------------------------- forward pass ---------------------------------

def ipyramid_flow_forward(image_nchw, params):
    n, c, h, w = image_nchw.shape
    f = params["w_embed"].shape[1]
    levels = LEVELS

    # Fold the (linear) 1x1 embedding into each per-level flow weight,
    # transposed so the kernel computes (F, C) @ (C, P_l).
    wt = [jnp.einsum("cf,fg->gc", params["w_embed"], params["w_flow"][l],
                     precision=_HI) for l in range(levels)]

    # Templates as (F, P_l); one copy, reused for every batch element.
    fm = [params["feat_mean"][l].reshape(f, (h >> l) * (w >> l))
          for l in range(levels)]

    # Constant pool / upsample matrices per level transition (trace-time).
    d_mats, u_mats = [], []
    for l in range(levels - 1):
        dm, um = _pool_upsample_mats(h >> l, w >> l)
        d_mats.append(dm)
        u_mats.append(um)

    # Free contiguous reshape: pixels on the lane axis, no transpose needed.
    x3 = image_nchw.reshape(n, c, h * w)

    def kernel(x_ref, w0_ref, w1_ref, w2_ref, fm0_ref, fm1_ref, fm2_ref,
               d0_ref, d1_ref, u0_ref, u1_ref, o_ref):
        wts = (w0_ref[...], w1_ref[...], w2_ref[...])
        fms = (fm0_ref[...], fm1_ref[...], fm2_ref[...])
        d0, d1 = d0_ref[...], d1_ref[...]
        u0, u1 = u0_ref[...], u1_ref[...]
        inv_f = 1.0 / f

        rows = []
        for b in range(n):                         # N is tiny & static: unrolled
            # Gaussian pyramid on the raw input (pool = constant matmul).
            g0 = x_ref[b]                                                # (C, P0)
            g1 = jnp.dot(g0, d0, preferred_element_type=jnp.float32)    # (C, P1)
            g2 = jnp.dot(g1, d1, preferred_element_type=jnp.float32)    # (C, P2)
            # Laplacian pyramid (nearest upsample = constant matmul).
            lap = (g0 - jnp.dot(g1, u0, preferred_element_type=jnp.float32),
                   g1 - jnp.dot(g2, u1, preferred_element_type=jnp.float32),
                   g2)
            # Folded embed+flow 1x1 conv, fused with |. - feat_mean|.
            diff = [jnp.abs(jnp.dot(wts[l], lap[l],
                                    preferred_element_type=jnp.float32) - fms[l])
                    for l in range(levels)]
            # compose_pyramid: coarse -> fine nearest-upsample + add.
            r = diff[2]
            r = jnp.dot(r, u1, preferred_element_type=jnp.float32) + diff[1]
            r = jnp.dot(r, u0, preferred_element_type=jnp.float32) + diff[0]
            # Channel mean (keepdim) -> one lane-dense output row.
            rows.append(jnp.sum(r, axis=0, keepdims=True) * inv_f)      # (1, P0)

        o_ref[...] = jnp.concatenate(rows, axis=0)                       # (N, P0)

    args = (x3, wt[0], wt[1], wt[2], fm[0], fm[1], fm[2],
            d_mats[0], d_mats[1], u_mats[0], u_mats[1])
    in_specs = [pl.BlockSpec(a.shape, lambda i, nd=a.ndim: (0,) * nd)
                for a in args]

    out2 = pl.pallas_call(
        kernel,
        out_shape=jax.ShapeDtypeStruct((n, h * w), jnp.float32),
        grid=(1,),
        in_specs=in_specs,
        out_specs=pl.BlockSpec((n, h * w), lambda i: (0, 0)),
        compiler_params=pltpu.CompilerParams(
            dimension_semantics=("arbitrary",)),
    )(*args)

    # TODO(synk): at realistic H, W add an M-tiled grid over pixel tiles with
    # dimension_semantics=("parallel",) so v7x's 2 TCs / 64 MiB VMEM are used.
    return out2.reshape(n, 1, h, w)                 # NCHW, channel kept = 1


# ------------------------- pure-JAX reference --------------------------------

def _reference_forward(image_nchw, params):
    """Unfused reference matching the original PyTorch-style pipeline."""
    x = jnp.transpose(image_nchw, (0, 2, 3, 1))                        # NHWC
    feat = jnp.einsum("nhwc,cf->nhwf", x, params["w_embed"], precision=_HI)

    def pool(t):
        nn, hh, ww, cc = t.shape
        return t.reshape(nn, hh // 2, 2, ww // 2, 2, cc).mean(axis=(2, 4))

    def up(t):
        return jnp.repeat(jnp.repeat(t, 2, axis=1), 2, axis=2)

    gauss = [feat]
    for _ in range(LEVELS - 1):
        gauss.append(pool(gauss[-1]))
    lap = [gauss[l] - up(gauss[l + 1]) for l in range(LEVELS - 1)] + [gauss[-1]]

    diffs = []
    for l in range(LEVELS):
        y = jnp.einsum("nhwf,fg->nhwg", lap[l], params["w_flow"][l],
                       precision=_HI)
        tmpl = jnp.transpose(params["feat_mean"][l], (0, 2, 3, 1))
        diffs.append(jnp.abs(y - tmpl))

    r = diffs[-1]
    for l in range(LEVELS - 2, -1, -1):
        r = up(r) + diffs[l]
    out = r.mean(axis=-1, keepdims=True)
    return jnp.transpose(out, (0, 3, 1, 2))


# --------------------------------- main --------------------------------------

if __name__ == "__main__":
    key = jax.random.PRNGKey(0)
    k_img, k_par = jax.random.split(key)

    N, C, H, W, F = 2, 4, 16, 16, 8
    image = jax.random.normal(k_img, (N, C, H, W), jnp.float32)
    params = make_params(k_par, C, F, H, W)

    out = jax.jit(ipyramid_flow_forward)(image, params)
    out = jax.block_until_ready(out)

    assert out.shape == (N, 1, H, W), out.shape
    assert out.dtype == jnp.float32

    ref = jax.block_until_ready(jax.jit(_reference_forward)(image, params))
    np.testing.assert_allclose(np.asarray(out), np.asarray(ref),
                               rtol=5e-3, atol=5e-3)
    print("KERNEL_OK")
</pallas_src>

<mosaic_0001>
module attributes {stable_mosaic.version = 11 : i64} {
  func.func @kernel(%arg0: i32, %arg1: memref<2x4x256xf32, #tpu.memory_space<vmem>>, %arg2: memref<8x4xf32, #tpu.memory_space<vmem>>, %arg3: memref<8x4xf32, #tpu.memory_space<vmem>>, %arg4: memref<8x4xf32, #tpu.memory_space<vmem>>, %arg5: memref<8x256xf32, #tpu.memory_space<vmem>>, %arg6: memref<8x64xf32, #tpu.memory_space<vmem>>, %arg7: memref<8x16xf32, #tpu.memory_space<vmem>>, %arg8: memref<256x64xf32, #tpu.memory_space<vmem>>, %arg9: memref<64x16xf32, #tpu.memory_space<vmem>>, %arg10: memref<64x256xf32, #tpu.memory_space<vmem>>, %arg11: memref<16x64xf32, #tpu.memory_space<vmem>>, %arg12: memref<2x256xf32, #tpu.memory_space<vmem>>) attributes {dimension_semantics = [#tpu.dimension_semantics<arbitrary>], iteration_bounds = array<i64: 1>, scalar_prefetch = 0 : i64, scratch_operands = 0 : i64, tpu.core_type = #tpu.core_type<tc>, window_params = [{pipeline_mode = #tpu.pipeline_mode<synchronous>, transform_indices = @transform_0, window_bounds = array<i64: 2, 4, 256>}, {pipeline_mode = #tpu.pipeline_mode<synchronous>, transform_indices = @transform_1, window_bounds = array<i64: 8, 4>}, {pipeline_mode = #tpu.pipeline_mode<synchronous>, transform_indices = @transform_2, window_bounds = array<i64: 8, 4>}, {pipeline_mode = #tpu.pipeline_mode<synchronous>, transform_indices = @transform_3, window_bounds = array<i64: 8, 4>}, {pipeline_mode = #tpu.pipeline_mode<synchronous>, transform_indices = @transform_4, window_bounds = array<i64: 8, 256>}, {pipeline_mode = #tpu.pipeline_mode<synchronous>, transform_indices = @transform_5, window_bounds = array<i64: 8, 64>}, {pipeline_mode = #tpu.pipeline_mode<synchronous>, transform_indices = @transform_6, window_bounds = array<i64: 8, 16>}, {pipeline_mode = #tpu.pipeline_mode<synchronous>, transform_indices = @transform_7, window_bounds = array<i64: 256, 64>}, {pipeline_mode = #tpu.pipeline_mode<synchronous>, transform_indices = @transform_8, window_bounds = array<i64: 64, 16>}, {pipeline_mode = #tpu.pipeline_mode<synchronous>, transform_indices = @transform_9, window_bounds = array<i64: 64, 256>}, {pipeline_mode = #tpu.pipeline_mode<synchronous>, transform_indices = @transform_10, window_bounds = array<i64: 16, 64>}, {pipeline_mode = #tpu.pipeline_mode<synchronous>, transform_indices = @transform_11, window_bounds = array<i64: 2, 256>}]} {
    %c0 = arith.constant 0 : index
    %c0_0 = arith.constant 0 : index
    %0 = vector.load %arg2[%c0, %c0_0] : memref<8x4xf32, #tpu.memory_space<vmem>>, vector<8x4xf32>
    %c0_1 = arith.constant 0 : index
    %c0_2 = arith.constant 0 : index
    %1 = vector.load %arg3[%c0_1, %c0_2] : memref<8x4xf32, #tpu.memory_space<vmem>>, vector<8x4xf32>
    %c0_3 = arith.constant 0 : index
    %c0_4 = arith.constant 0 : index
    %2 = vector.load %arg4[%c0_3, %c0_4] : memref<8x4xf32, #tpu.memory_space<vmem>>, vector<8x4xf32>
    %c0_5 = arith.constant 0 : index
    %c0_6 = arith.constant 0 : index
    %3 = vector.load %arg5[%c0_5, %c0_6] : memref<8x256xf32, #tpu.memory_space<vmem>>, vector<8x256xf32>
    %c0_7 = arith.constant 0 : index
    %c0_8 = arith.constant 0 : index
    %4 = vector.load %arg6[%c0_7, %c0_8] : memref<8x64xf32, #tpu.memory_space<vmem>>, vector<8x64xf32>
    %c0_9 = arith.constant 0 : index
    %c0_10 = arith.constant 0 : index
    %5 = vector.load %arg7[%c0_9, %c0_10] : memref<8x16xf32, #tpu.memory_space<vmem>>, vector<8x16xf32>
    %c0_11 = arith.constant 0 : index
    %c0_12 = arith.constant 0 : index
    %6 = vector.load %arg8[%c0_11, %c0_12] : memref<256x64xf32, #tpu.memory_space<vmem>>, vector<256x64xf32>
    %c0_13 = arith.constant 0 : index
    %c0_14 = arith.constant 0 : index
    %7 = vector.load %arg9[%c0_13, %c0_14] : memref<64x16xf32, #tpu.memory_space<vmem>>, vector<64x16xf32>
    %c0_15 = arith.constant 0 : index
    %c0_16 = arith.constant 0 : index
    %8 = vector.load %arg10[%c0_15, %c0_16] : memref<64x256xf32, #tpu.memory_space<vmem>>, vector<64x256xf32>
    %c0_17 = arith.constant 0 : index
    %c0_18 = arith.constant 0 : index
    %9 = vector.load %arg11[%c0_17, %c0_18] : memref<16x64xf32, #tpu.memory_space<vmem>>, vector<16x64xf32>
    %c0_19 = arith.constant 0 : index
    %c0_20 = arith.constant 0 : index
    %c0_21 = arith.constant 0 : index
    %10 = vector.load %arg1[%c0_19, %c0_20, %c0_21] : memref<2x4x256xf32, #tpu.memory_space<vmem>>, vector<1x4x256xf32>
    %11 = vector.shape_cast %10 : vector<1x4x256xf32> to vector<4x256xf32>
    %cst = arith.constant dense<0.000000e+00> : vector<4x64xf32>
    %12 = tpu.matmul %11, %6, %cst {dimension_numbers = #tpu.dot_dimension_numbers<[1], [0], [0], [1], [0, 0, 1, 1], [], []>} : vector<4x256xf32>, vector<256x64xf32>, vector<4x64xf32> -> vector<4x64xf32>
    %cst_22 = arith.constant dense<0.000000e+00> : vector<4x16xf32>
    %13 = tpu.matmul %12, %7, %cst_22 {dimension_numbers = #tpu.dot_dimension_numbers<[1], [0], [0], [1], [0, 0, 1, 1], [], []>} : vector<4x64xf32>, vector<64x16xf32>, vector<4x16xf32> -> vector<4x16xf32>
    %cst_23 = arith.constant dense<0.000000e+00> : vector<4x256xf32>
    %14 = tpu.matmul %12, %8, %cst_23 {dimension_numbers = #tpu.dot_dimension_numbers<[1], [0], [0], [1], [0, 0, 1, 1], [], []>} : vector<4x64xf32>, vector<64x256xf32>, vector<4x256xf32> -> vector<4x256xf32>
    %15 = arith.subf %11, %14 : vector<4x256xf32>
    %cst_24 = arith.constant dense<0.000000e+00> : vector<4x64xf32>
    %16 = tpu.matmul %13, %9, %cst_24 {dimension_numbers = #tpu.dot_dimension_numbers<[1], [0], [0], [1], [0, 0, 1, 1], [], []>} : vector<4x16xf32>, vector<16x64xf32>, vector<4x64xf32> -> vector<4x64xf32>
    %17 = arith.subf %12, %16 : vector<4x64xf32>
    %cst_25 = arith.constant dense<0.000000e+00> : vector<8x256xf32>
    %18 = tpu.matmul %0, %15, %cst_25 {dimension_numbers = #tpu.dot_dimension_numbers<[1], [0], [0], [1], [0, 0, 1, 1], [], []>} : vector<8x4xf32>, vector<4x256xf32>, vector<8x256xf32> -> vector<8x256xf32>
    %19 = arith.subf %18, %3 : vector<8x256xf32>
    %20 = math.absf %19 : vector<8x256xf32>
    %cst_26 = arith.constant dense<0.000000e+00> : vector<8x64xf32>
    %21 = tpu.matmul %1, %17, %cst_26 {dimension_numbers = #tpu.dot_dimension_numbers<[1], [0], [0], [1], [0, 0, 1, 1], [], []>} : vector<8x4xf32>, vector<4x64xf32>, vector<8x64xf32> -> vector<8x64xf32>
    %22 = arith.subf %21, %4 : vector<8x64xf32>
    %23 = math.absf %22 : vector<8x64xf32>
    %cst_27 = arith.constant dense<0.000000e+00> : vector<8x16xf32>
    %24 = tpu.matmul %2, %13, %cst_27 {dimension_numbers = #tpu.dot_dimension_numbers<[1], [0], [0], [1], [0, 0, 1, 1], [], []>} : vector<8x4xf32>, vector<4x16xf32>, vector<8x16xf32> -> vector<8x16xf32>
    %25 = arith.subf %24, %5 : vector<8x16xf32>
    %26 = math.absf %25 : vector<8x16xf32>
    %cst_28 = arith.constant dense<0.000000e+00> : vector<8x64xf32>
    %27 = tpu.matmul %26, %9, %cst_28 {dimension_numbers = #tpu.dot_dimension_numbers<[1], [0], [0], [1], [0, 0, 1, 1], [], []>} : vector<8x16xf32>, vector<16x64xf32>, vector<8x64xf32> -> vector<8x64xf32>
    %28 = arith.addf %27, %23 : vector<8x64xf32>
    %cst_29 = arith.constant dense<0.000000e+00> : vector<8x256xf32>
    %29 = tpu.matmul %28, %8, %cst_29 {dimension_numbers = #tpu.dot_dimension_numbers<[1], [0], [0], [1], [0, 0, 1, 1], [], []>} : vector<8x64xf32>, vector<64x256xf32>, vector<8x256xf32> -> vector<8x256xf32>
    %30 = arith.addf %29, %20 : vector<8x256xf32>
    %cst_30 = arith.constant dense<0.000000e+00> : vector<256xf32>
    %31 = vector.multi_reduction <add>, %30, %cst_30 [0] : vector<8x256xf32> to vector<256xf32>
    %32 = vector.shape_cast %31 : vector<256xf32> to vector<1x256xf32>
    %cst_31 = arith.constant 1.250000e-01 : f32
    %33 = vector.broadcast %cst_31 : f32 to vector<1x256xf32>
    %34 = arith.mulf %32, %33 : vector<1x256xf32>
    %c1 = arith.constant 1 : index
    %c0_32 = arith.constant 0 : index
    %c0_33 = arith.constant 0 : index
    %35 = vector.load %arg1[%c1, %c0_32, %c0_33] : memref<2x4x256xf32, #tpu.memory_space<vmem>>, vector<1x4x256xf32>
    %36 = vector.shape_cast %35 : vector<1x4x256xf32> to vector<4x256xf32>
    %cst_34 = arith.constant dense<0.000000e+00> : vector<4x64xf32>
    %37 = tpu.matmul %36, %6, %cst_34 {dimension_numbers = #tpu.dot_dimension_numbers<[1], [0], [0], [1], [0, 0, 1, 1], [], []>} : vector<4x256xf32>, vector<256x64xf32>, vector<4x64xf32> -> vector<4x64xf32>
    %cst_35 = arith.constant dense<0.000000e+00> : vector<4x16xf32>
    %38 = tpu.matmul %37, %7, %cst_35 {dimension_numbers = #tpu.dot_dimension_numbers<[1], [0], [0], [1], [0, 0, 1, 1], [], []>} : vector<4x64xf32>, vector<64x16xf32>, vector<4x16xf32> -> vector<4x16xf32>
    %cst_36 = arith.constant dense<0.000000e+00> : vector<4x256xf32>
    %39 = tpu.matmul %37, %8, %cst_36 {dimension_numbers = #tpu.dot_dimension_numbers<[1], [0], [0], [1], [0, 0, 1, 1], [], []>} : vector<4x64xf32>, vector<64x256xf32>, vector<4x256xf32> -> vector<4x256xf32>
    %40 = arith.subf %36, %39 : vector<4x256xf32>
    %cst_37 = arith.constant dense<0.000000e+00> : vector<4x64xf32>
    %41 = tpu.matmul %38, %9, %cst_37 {dimension_numbers = #tpu.dot_dimension_numbers<[1], [0], [0], [1], [0, 0, 1, 1], [], []>} : vector<4x16xf32>, vector<16x64xf32>, vector<4x64xf32> -> vector<4x64xf32>
    %42 = arith.subf %37, %41 : vector<4x64xf32>
    %cst_38 = arith.constant dense<0.000000e+00> : vector<8x256xf32>
    %43 = tpu.matmul %0, %40, %cst_38 {dimension_numbers = #tpu.dot_dimension_numbers<[1], [0], [0], [1], [0, 0, 1, 1], [], []>} : vector<8x4xf32>, vector<4x256xf32>, vector<8x256xf32> -> vector<8x256xf32>
    %44 = arith.subf %43, %3 : vector<8x256xf32>
    %45 = math.absf %44 : vector<8x256xf32>
    %cst_39 = arith.constant dense<0.000000e+00> : vector<8x64xf32>
    %46 = tpu.matmul %1, %42, %cst_39 {dimension_numbers = #tpu.dot_dimension_numbers<[1], [0], [0], [1], [0, 0, 1, 1], [], []>} : vector<8x4xf32>, vector<4x64xf32>, vector<8x64xf32> -> vector<8x64xf32>
    %47 = arith.subf %46, %4 : vector<8x64xf32>
    %48 = math.absf %47 : vector<8x64xf32>
    %cst_40 = arith.constant dense<0.000000e+00> : vector<8x16xf32>
    %49 = tpu.matmul %2, %38, %cst_40 {dimension_numbers = #tpu.dot_dimension_numbers<[1], [0], [0], [1], [0, 0, 1, 1], [], []>} : vector<8x4xf32>, vector<4x16xf32>, vector<8x16xf32> -> vector<8x16xf32>
    %50 = arith.subf %49, %5 : vector<8x16xf32>
    %51 = math.absf %50 : vector<8x16xf32>
    %cst_41 = arith.constant dense<0.000000e+00> : vector<8x64xf32>
    %52 = tpu.matmul %51, %9, %cst_41 {dimension_numbers = #tpu.dot_dimension_numbers<[1], [0], [0], [1], [0, 0, 1, 1], [], []>} : vector<8x16xf32>, vector<16x64xf32>, vector<8x64xf32> -> vector<8x64xf32>
    %53 = arith.addf %52, %48 : vector<8x64xf32>
    %cst_42 = arith.constant dense<0.000000e+00> : vector<8x256xf32>
    %54 = tpu.matmul %53, %8, %cst_42 {dimension_numbers = #tpu.dot_dimension_numbers<[1], [0], [0], [1], [0, 0, 1, 1], [], []>} : vector<8x64xf32>, vector<64x256xf32>, vector<8x256xf32> -> vector<8x256xf32>
    %55 = arith.addf %54, %45 : vector<8x256xf32>
    %cst_43 = arith.constant dense<0.000000e+00> : vector<256xf32>
    %56 = vector.multi_reduction <add>, %55, %cst_43 [0] : vector<8x256xf32> to vector<256xf32>
    %57 = vector.shape_cast %56 : vector<256xf32> to vector<1x256xf32>
    %cst_44 = arith.constant 1.250000e-01 : f32
    %58 = vector.broadcast %cst_44 : f32 to vector<1x256xf32>
    %59 = arith.mulf %57, %58 : vector<1x256xf32>
    %60 = tpu.concatenate %34, %59 in 0 : vector<1x256xf32>, vector<1x256xf32> -> vector<2x256xf32>
    %c0_45 = arith.constant 0 : index
    %c0_46 = arith.constant 0 : index
    %61 = vector.load %arg12[%c0_45, %c0_46] : memref<2x256xf32, #tpu.memory_space<vmem>>, vector<2x256xf32>
    tpu.vector_store %arg12[%c0_45, %c0_46], %60 {strides = array<i32>} : memref<2x256xf32, #tpu.memory_space<vmem>>, vector<2x256xf32>,
    return
  }
  func.func @transform_0(%arg0: i32) -> (i32, i32, i32) {
    %c0_i32 = arith.constant 0 : i32
    %c0_i32_0 = arith.constant 0 : i32
    %c0_i32_1 = arith.constant 0 : i32
    %c0_i32_2 = arith.constant 0 : i32
    return %c0_i32, %c0_i32_0, %c0_i32_1 : i32, i32, i32
  }
  func.func @transform_1(%arg0: i32) -> (i32, i32) {
    %c0_i32 = arith.constant 0 : i32
    %c0_i32_0 = arith.constant 0 : i32
    %c0_i32_1 = arith.constant 0 : i32
    return %c0_i32, %c0_i32_0 : i32, i32
  }
  func.func @transform_2(%arg0: i32) -> (i32, i32) {
    %c0_i32 = arith.constant 0 : i32
    %c0_i32_0 = arith.constant 0 : i32
    %c0_i32_1 = arith.constant 0 : i32
    return %c0_i32, %c0_i32_0 : i32, i32
  }
  func.func @transform_3(%arg0: i32) -> (i32, i32) {
    %c0_i32 = arith.constant 0 : i32
    %c0_i32_0 = arith.constant 0 : i32
    %c0_i32_1 = arith.constant 0 : i32
    return %c0_i32, %c0_i32_0 : i32, i32
  }
  func.func @transform_4(%arg0: i32) -> (i32, i32) {
    %c0_i32 = arith.constant 0 : i32
    %c0_i32_0 = arith.constant 0 : i32
    %c0_i32_1 = arith.constant 0 : i32
    return %c0_i32, %c0_i32_0 : i32, i32
  }
  func.func @transform_5(%arg0: i32) -> (i32, i32) {
    %c0_i32 = arith.constant 0 : i32
    %c0_i32_0 = arith.constant 0 : i32
    %c0_i32_1 = arith.constant 0 : i32
    return %c0_i32, %c0_i32_0 : i32, i32
  }
  func.func @transform_6(%arg0: i32) -> (i32, i32) {
    %c0_i32 = arith.constant 0 : i32
    %c0_i32_0 = arith.constant 0 : i32
    %c0_i32_1 = arith.constant 0 : i32
    return %c0_i32, %c0_i32_0 : i32, i32
  }
  func.func @transform_7(%arg0: i32) -> (i32, i32) {
    %c0_i32 = arith.constant 0 : i32
    %c0_i32_0 = arith.constant 0 : i32
    %c0_i32_1 = arith.constant 0 : i32
    return %c0_i32, %c0_i32_0 : i32, i32
  }
  func.func @transform_8(%arg0: i32) -> (i32, i32) {
    %c0_i32 = arith.constant 0 : i32
    %c0_i32_0 = arith.constant 0 : i32
    %c0_i32_1 = arith.constant 0 : i32
    return %c0_i32, %c0_i32_0 : i32, i32
  }
  func.func @transform_9(%arg0: i32) -> (i32, i32) {
    %c0_i32 = arith.constant 0 : i32
    %c0_i32_0 = arith.constant 0 : i32
    %c0_i32_1 = arith.constant 0 : i32
    return %c0_i32, %c0_i32_0 : i32, i32
  }
  func.func @transform_10(%arg0: i32) -> (i32, i32) {
    %c0_i32 = arith.constant 0 : i32
    %c0_i32_0 = arith.constant 0 : i32
    %c0_i32_1 = arith.constant 0 : i32
    return %c0_i32, %c0_i32_0 : i32, i32
  }
  func.func @transform_11(%arg0: i32) -> (i32, i32) {
    %c0_i32 = arith.constant 0 : i32
    %c0_i32_0 = arith.constant 0 : i32
    %c0_i32_1 = arith.constant 0 : i32
    return %c0_i32, %c0_i32_0 : i32, i32
  }
}

</mosaic_0001>

<llo_original>
// kernel: ipyramid_flow_forward.1
$region0: #{ipyramid_flow_forward.1}
  #allocation0 [shape = 'u32[]', space=smem, size = 0x4, offset = 0x4, fixed_abs, tag = 'smem constant byte address 0x4 - core index']
  #allocation1 [shape = 'u32[144,128]{1,0:T(1,128)}', space=vmem, size = 0x12000, scoped, tag = 'internal scratch']
  %s0 = inlined_call_operand.vmem [shape: f32[2,4,256], index: 0, kind: input, shape index: {}]
  %s1 = inlined_call_operand.vmem [shape: f32[8,4], index: 1, kind: input, shape index: {}]
  %s2 = inlined_call_operand.vmem [shape: f32[8,4], index: 2, kind: input, shape index: {}]
  %s3 = inlined_call_operand.vmem [shape: f32[8,4], index: 3, kind: input, shape index: {}]
  %s4 = inlined_call_operand.vmem [shape: f32[8,256], index: 4, kind: input, shape index: {}]
  %s5 = inlined_call_operand.vmem [shape: f32[8,64], index: 5, kind: input, shape index: {}]
  %s6 = inlined_call_operand.vmem [shape: f32[8,16], index: 6, kind: input, shape index: {}]
  %s7 = inlined_call_operand.vmem [shape: f32[256,64], index: 7, kind: input, shape index: {}]
  %s8 = inlined_call_operand.vmem [shape: f32[64,16], index: 8, kind: input, shape index: {}]
  %s9 = inlined_call_operand.vmem [shape: f32[64,256], index: 9, kind: input, shape index: {}]
  %s10 = inlined_call_operand.vmem [shape: f32[16,64], index: 10, kind: input, shape index: {}]
  %s11 = inlined_call_operand.vmem [shape: f32[2,256], index: 11, kind: output, shape index: {}]
  %s12 = sld [smem:[#allocation0]]
  $region54: #{ipyramid_flow_forward.1} parent=0
    _
  %s14 = ssub.s32 1, %s12
  %s15 = scalar_select 0, %s14, %s12
  // Predicated region
  $region2: #{ipyramid_flow_forward.1} parent=0 // pred_check
    _
  $region3: #{ipyramid_flow_forward.1} parent=0 // pred_check_branch
    %17 = sbr.rel (0) target = $region5
  $region4: #{ipyramid_flow_forward.1} parent=0 // pred_region
    _
  $region5: #{ipyramid_flow_forward.1} parent=0 // pred_fallthru
    _
  // Predicated region
  $region6: #{ipyramid_flow_forward.1} parent=0 // pred_check
    _
  $region7: #{ipyramid_flow_forward.1} parent=0 // pred_check_branch
    %19 = sbr.rel (0) target = $region9
  $region8: #{ipyramid_flow_forward.1} parent=0 // pred_region
    _
  $region9: #{ipyramid_flow_forward.1} parent=0 // pred_fallthru
    _
  // Predicated region
  $region10: #{ipyramid_flow_forward.1} parent=0 // pred_check
    _
  $region11: #{ipyramid_flow_forward.1} parent=0 // pred_check_branch
    %21 = sbr.rel (0) target = $region13
  $region12: #{ipyramid_flow_forward.1} parent=0 // pred_region
    _
  $region13: #{ipyramid_flow_forward.1} parent=0 // pred_fallthru
    _
  // Predicated region
  $region14: #{ipyramid_flow_forward.1} parent=0 // pred_check
    _
  $region15: #{ipyramid_flow_forward.1} parent=0 // pred_check_branch
    %23 = sbr.rel (0) target = $region17
  $region16: #{ipyramid_flow_forward.1} parent=0 // pred_region
    _
  $region17: #{ipyramid_flow_forward.1} parent=0 // pred_fallthru
    _
  // Predicated region
  $region18: #{ipyramid_flow_forward.1} parent=0 // pred_check
    _
  $region19: #{ipyramid_flow_forward.1} parent=0 // pred_check_branch
    %25 = sbr.rel (0) target = $region21
  $region20: #{ipyramid_flow_forward.1} parent=0 // pred_region
    _
  $region21: #{ipyramid_flow_forward.1} parent=0 // pred_fallthru
    _
  // Predicated region
  $region22: #{ipyramid_flow_forward.1} parent=0 // pred_check
    _
  $region23: #{ipyramid_flow_forward.1} parent=0 // pred_check_branch
    %27 = sbr.rel (0) target = $region25
  $region24: #{ipyramid_flow_forward.1} parent=0 // pred_region
    _
  $region25: #{ipyramid_flow_forward.1} parent=0 // pred_fallthru
    _
  // Predicated region
  $region26: #{ipyramid_flow_forward.1} parent=0 // pred_check
    _
  $region27: #{ipyramid_flow_forward.1} parent=0 // pred_check_branch
    %29 = sbr.rel (0) target = $region29
  $region28: #{ipyramid_flow_forward.1} parent=0 // pred_region
    _
  $region29: #{ipyramid_flow_forward.1} parent=0 // pred_fallthru
    _
  // Predicated region
  $region30: #{ipyramid_flow_forward.1} parent=0 // pred_check
    _
  $region31: #{ipyramid_flow_forward.1} parent=0 // pred_check_branch
    %31 = sbr.rel (0) target = $region33
  $region32: #{ipyramid_flow_forward.1} parent=0 // pred_region
    _
  $region33: #{ipyramid_flow_forward.1} parent=0 // pred_fallthru
    _
  // Predicated region
  $region34: #{ipyramid_flow_forward.1} parent=0 // pred_check
    _
  $region35: #{ipyramid_flow_forward.1} parent=0 // pred_check_branch
    %33 = sbr.rel (0) target = $region37
  $region36: #{ipyramid_flow_forward.1} parent=0 // pred_region
    _
  $region37: #{ipyramid_flow_forward.1} parent=0 // pred_fallthru
    _
  // Predicated region
  $region38: #{ipyramid_flow_forward.1} parent=0 // pred_check
    _
  $region39: #{ipyramid_flow_forward.1} parent=0 // pred_check_branch
    %35 = sbr.rel (0) target = $region41
  $region40: #{ipyramid_flow_forward.1} parent=0 // pred_region
    _
  $region41: #{ipyramid_flow_forward.1} parent=0 // pred_fallthru
    _
  // Predicated region
  $region42: #{ipyramid_flow_forward.1} parent=0 // pred_check
    _
  $region43: #{ipyramid_flow_forward.1} parent=0 // pred_check_branch
    %37 = sbr.rel (0) target = $region45
  $region44: #{ipyramid_flow_forward.1} parent=0 // pred_region
    _
  $region45: #{ipyramid_flow_forward.1} parent=0 // pred_fallthru
    _
  %v38 = vld [vmem:[%s1] sm:$0xff]
  %v39 = vld [vmem:[%s2] sm:$0xff]
  %v40 = vld [vmem:[%s3] sm:$0xff]
  %v41 = vld [vmem:[%s4] sm:$0xff]
  %v42 = vld [vmem:[%s4 + $0x8] sm:$0xff]
  %v43 = vld [vmem:[%s5] sm:$0xff]
  %v44 = vld [vmem:[%s6] sm:$0xff]
  %v45 = vld [vmem:[%s7] sm:$0xff]
  %v46 = vld [vmem:[%s7 + $0x8] sm:$0xff]
  %v47 = vld [vmem:[%s7 + $0x10] sm:$0xff]
  %v48 = vld [vmem:[%s7 + $0x18] sm:$0xff]
  %v49 = vld [vmem:[%s7 + $0x20] sm:$0xff]
  %v50 = vld [vmem:[%s7 + $0x28] sm:$0xff]
  %v51 = vld [vmem:[%s7 + $0x30] sm:$0xff]
  %v52 = vld [vmem:[%s7 + $0x38] sm:$0xff]
  %v53 = vld [vmem:[%s7 + $0x40] sm:$0xff]
  %v54 = vld [vmem:[%s7 + $0x48] sm:$0xff]
  %v55 = vld [vmem:[%s7 + $0x50] sm:$0xff]
  %v56 = vld [vmem:[%s7 + $0x58] sm:$0xff]
  %v57 = vld [vmem:[%s7 + $0x60] sm:$0xff]
  %v58 = vld [vmem:[%s7 + $0x68] sm:$0xff]
  %v59 = vld [vmem:[%s7 + $0x70] sm:$0xff]
  %v60 = vld [vmem:[%s7 + $0x78] sm:$0xff]
  %v61 = vld [vmem:[%s7 + $0x80] sm:$0xff]
  %v62 = vld [vmem:[%s7 + $0x88] sm:$0xff]
  %v63 = vld [vmem:[%s7 + $0x90] sm:$0xff]
  %v64 = vld [vmem:[%s7 + $0x98] sm:$0xff]
  %v65 = vld [vmem:[%s7 + $0xa0] sm:$0xff]
  %v66 = vld [vmem:[%s7 + $0xa8] sm:$0xff]
  %v67 = vld [vmem:[%s7 + $0xb0] sm:$0xff]
  %v68 = vld [vmem:[%s7 + $0xb8] sm:$0xff]
  %v69 = vld [vmem:[%s7 + $0xc0] sm:$0xff]
  %v70 = vld [vmem:[%s7 + $0xc8] sm:$0xff]
  %v71 = vld [vmem:[%s7 + $0xd0] sm:$0xff]
  %v72 = vld [vmem:[%s7 + $0xd8] sm:$0xff]
  %v73 = vld [vmem:[%s7 + $0xe0] sm:$0xff]
  %v74 = vld [vmem:[%s7 + $0xe8] sm:$0xff]
  %v75 = vld [vmem:[%s7 + $0xf0] sm:$0xff]
  %v76 = vld [vmem:[%s7 + $0xf8] sm:$0xff]
  %v77 = vld [vmem:[%s8] sm:$0xff]
  %v78 = vld [vmem:[%s8 + $0x8] sm:$0xff]
  %v79 = vld [vmem:[%s8 + $0x10] sm:$0xff]
  %v80 = vld [vmem:[%s8 + $0x18] sm:$0xff]
  %v81 = vld [vmem:[%s8 + $0x20] sm:$0xff]
  %v82 = vld [vmem:[%s8 + $0x28] sm:$0xff]
  %v83 = vld [vmem:[%s8 + $0x30] sm:$0xff]
  %v84 = vld [vmem:[%s8 + $0x38] sm:$0xff]
  %v85 = vld [vmem:[%s9] sm:$0xff]
  %v86 = vld [vmem:[%s9 + $0x8] sm:$0xff]
  %v87 = vld [vmem:[%s9 + $0x10] sm:$0xff]
  %v88 = vld [vmem:[%s9 + $0x18] sm:$0xff]
  %v89 = vld [vmem:[%s9 + $0x20] sm:$0xff]
  %v90 = vld [vmem:[%s9 + $0x28] sm:$0xff]
  %v91 = vld [vmem:[%s9 + $0x30] sm:$0xff]
  %v92 = vld [vmem:[%s9 + $0x38] sm:$0xff]
  %v93 = vld [vmem:[%s9 + $0x40] sm:$0xff]
  %v94 = vld [vmem:[%s9 + $0x48] sm:$0xff]
  %v95 = vld [vmem:[%s9 + $0x50] sm:$0xff]
  %v96 = vld [vmem:[%s9 + $0x58] sm:$0xff]
  %v97 = vld [vmem:[%s9 + $0x60] sm:$0xff]
  %v98 = vld [vmem:[%s9 + $0x68] sm:$0xff]
  %v99 = vld [vmem:[%s9 + $0x70] sm:$0xff]
  %v100 = vld [vmem:[%s9 + $0x78] sm:$0xff]
  %v101 = vld [vmem:[%s10] sm:$0xff]
  %v102 = vld [vmem:[%s10 + $0x8] sm:$0xff]
  %v103 = vld [vmem:[%s0] sm:$0xff]
  %v105 = vcombine.high %v103, %v103
  %107 = vmatprep.subr.mxu0 0.0
  %108 = vmatpush1.msra.mxu0 %v60
  %109 = vmatprep.subr.mxu0 0.0
  %110 = vmatpush1.msra.mxu0 %v59
  %111 = vmatprep.subr.mxu0 0.0
  %112 = vmatpush1.msra.mxu0 %v58
  %113 = vmatprep.subr.mxu0 0.0
  %114 = vmatpush1.msra.mxu0 %v57
  %115 = vmatprep.subr.mxu0 0.0
  %116 = vmatpush1.msra.mxu0 %v56
  %117 = vmatprep.subr.mxu0 0.0
  %118 = vmatpush1.msra.mxu0 %v55
  %119 = vmatprep.subr.mxu0 0.0
  %120 = vmatpush1.msra.mxu0 %v54
  %121 = vmatprep.subr.mxu0 0.0
  %122 = vmatpush1.msra.mxu0 %v53
  %123 = vmatprep.subr.mxu0 0.0
  %124 = vmatpush1.msra.mxu0 %v52
  %125 = vmatprep.subr.mxu0 0.0
  %126 = vmatpush1.msra.mxu0 %v51
  %127 = vmatprep.subr.mxu0 0.0
  %128 = vmatpush1.msra.mxu0 %v50
  %129 = vmatprep.subr.mxu0 0.0
  %130 = vmatpush1.msra.mxu0 %v49
  %131 = vmatprep.subr.mxu0 0.0
  %132 = vmatpush1.msra.mxu0 %v48
  %133 = vmatprep.subr.mxu0 0.0
  %134 = vmatpush1.msra.mxu0 %v47
  %135 = vmatprep.subr.mxu0 0.0
  %136 = vmatpush1.msra.mxu0 %v46
  %137 = vmatprep.subr.mxu0 0.0
  %138 = vmatpush1.msra.mxu0 %v45
  %139 = vmatprep.subr.mxu0 0.0
  %140 = vmatpush2.msra.mxu0 %v76
  %141 = vmatprep.subr.mxu0 0.0
  %142 = vmatpush2.msra.mxu0 %v75
  %143 = vmatprep.subr.mxu0 0.0
  %144 = vmatpush2.msra.mxu0 %v74
  %145 = vmatprep.subr.mxu0 0.0
  %146 = vmatpush2.msra.mxu0 %v73
  %147 = vmatprep.subr.mxu0 0.0
  %148 = vmatpush2.msra.mxu0 %v72
  %149 = vmatprep.subr.mxu0 0.0
  %150 = vmatpush2.msra.mxu0 %v71
  %151 = vmatprep.subr.mxu0 0.0
  %152 = vmatpush2.msra.mxu0 %v70
  %153 = vmatprep.subr.mxu0 0.0
  %154 = vmatpush2.msra.mxu0 %v69
  %155 = vmatprep.subr.mxu0 0.0
  %156 = vmatpush2.msra.mxu0 %v68
  %157 = vmatprep.subr.mxu0 0.0
  %158 = vmatpush2.msra.mxu0 %v67
  %159 = vmatprep.subr.mxu0 0.0
  %160 = vmatpush2.msra.mxu0 %v66
  %161 = vmatprep.subr.mxu0 0.0
  %162 = vmatpush2.msra.mxu0 %v65
  %163 = vmatprep.subr.mxu0 0.0
  %164 = vmatpush2.msra.mxu0 %v64
  %165 = vmatprep.subr.mxu0 0.0
  %166 = vmatpush2.msra.mxu0 %v63
  %167 = vmatprep.subr.mxu0 0.0
  %168 = vmatpush2.msra.mxu0 %v62
  %169 = vmatprep.subr.mxu0 0.0
  %170 = vmatpush2.msra.mxu0 %v61
  %171 = vmatprep.mubr.f32.mxu0 %v105
  %172 = vmatmul.mubr.f32.gmra.mxu0 %v103
  %v173 = vpop.f32.mrf.mxu0
  %v174 = vadd.f32 0.0, %v173
  %v175 = vpop.f32.mrf.mxu0
  %176 = vdwg.mxu0
  %vm177 = vcmask 523264
  %v179 = vsel %vm177, %v174, 0
  %181 = vmatprep.subr.mxu0 0.0
  %182 = vmatpush1.msra.mxu0 0.0
  %183 = vmatprep.subr.mxu0 0.0
  %184 = vmatpush1.msra.mxu0 0.0
  %185 = vmatprep.subr.mxu0 0.0
  %186 = vmatpush1.msra.mxu0 0.0
  %187 = vmatprep.subr.mxu0 0.0
  %188 = vmatpush1.msra.mxu0 0.0
  %189 = vmatprep.subr.mxu0 0.0
  %190 = vmatpush1.msra.mxu0 0.0
  %191 = vmatprep.subr.mxu0 0.0
  %192 = vmatpush1.msra.mxu0 0.0
  %193 = vmatprep.subr.mxu0 0.0
  %194 = vmatpush1.msra.mxu0 0.0
  %195 = vmatprep.subr.mxu0 0.0
  %196 = vmatpush1.msra.mxu0 0.0
  %197 = vmatprep.subr.mxu0 0.0
  %198 = vmatpush1.msra.mxu0 %v84
  %199 = vmatprep.subr.mxu0 0.0
  %200 = vmatpush1.msra.mxu0 %v83
  %201 = vmatprep.subr.mxu0 0.0
  %202 = vmatpush1.msra.mxu0 %v82
  %203 = vmatprep.subr.mxu0 0.0
  %204 = vmatpush1.msra.mxu0 %v81
  %205 = vmatprep.subr.mxu0 0.0
  %206 = vmatpush1.msra.mxu0 %v80
  %207 = vmatprep.subr.mxu0 0.0
  %208 = vmatpush1.msra.mxu0 %v79
  %209 = vmatprep.subr.mxu0 0.0
  %210 = vmatpush1.msra.mxu0 %v78
  %211 = vmatprep.subr.mxu0 0.0
  %212 = vmatpush1.msra.mxu0 %v77
  %213 = vmatprep.subr.mxu0 0.0
  %214 = vmatpush2.msra.mxu0 0.0
  %215 = vmatprep.subr.mxu0 0.0
  %216 = vmatpush2.msra.mxu0 0.0
  %217 = vmatprep.subr.mxu0 0.0
  %218 = vmatpush2.msra.mxu0 0.0
  %219 = vmatprep.subr.mxu0 0.0
  %220 = vmatpush2.msra.mxu0 0.0
  %221 = vmatprep.subr.mxu0 0.0
  %222 = vmatpush2.msra.mxu0 0.0
  %223 = vmatprep.subr.mxu0 0.0
  %224 = vmatpush2.msra.mxu0 0.0
  %225 = vmatprep.subr.mxu0 0.0
  %226 = vmatpush2.msra.mxu0 0.0
  %227 = vmatprep.subr.mxu0 0.0
  %228 = vmatpush2.msra.mxu0 0.0
  %229 = vmatprep.subr.mxu0 0.0
  %230 = vmatpush2.msra.mxu0 0.0
  %231 = vmatprep.subr.mxu0 0.0
  %232 = vmatpush2.msra.mxu0 0.0
  %233 = vmatprep.subr.mxu0 0.0
  %234 = vmatpush2.msra.mxu0 0.0
  %235 = vmatprep.subr.mxu0 0.0
  %236 = vmatpush2.msra.mxu0 0.0
  %237 = vmatprep.subr.mxu0 0.0
  %238 = vmatpush2.msra.mxu0 0.0
  %239 = vmatprep.subr.mxu0 0.0
  %240 = vmatpush2.msra.mxu0 0.0
  %241 = vmatprep.subr.mxu0 0.0
  %242 = vmatpush2.msra.mxu0 0.0
  %243 = vmatprep.subr.mxu0 0.0
  %244 = vmatpush2.msra.mxu0 0.0
  %245 = vmatprep.mubr.f32.mxu0 0.0
  %246 = vmatmul.mubr.f32.gmra.mxu0 %v179
  %v247 = vpop.f32.mrf.mxu0
  %v248 = vadd.f32 0.0, %v247
  %v249 = vpop.f32.mrf.mxu0
  %250 = vdwg.mxu0
  %251 = vmatprep.subr.mxu0 0.0
  %252 = vmatpush1.msra.mxu0 0.0
  %253 = vmatprep.subr.mxu0 0.0
  %254 = vmatpush1.msra.mxu0 0.0
  %255 = vmatprep.subr.mxu0 0.0
  %256 = vmatpush1.msra.mxu0 0.0
  %257 = vmatprep.subr.mxu0 0.0
  %258 = vmatpush1.msra.mxu0 0.0
  %259 = vmatprep.subr.mxu0 0.0
  %260 = vmatpush1.msra.mxu0 0.0
  %261 = vmatprep.subr.mxu0 0.0
  %262 = vmatpush1.msra.mxu0 0.0
  %263 = vmatprep.subr.mxu0 0.0
  %264 = vmatpush1.msra.mxu0 0.0
  %265 = vmatprep.subr.mxu0 0.0
  %266 = vmatpush1.msra.mxu0 0.0
  %267 = vmatprep.subr.mxu0 %v100
  %268 = vmatpush1.msra.mxu0 %v99
  %269 = vmatprep.subr.mxu0 %v98
  %270 = vmatpush1.msra.mxu0 %v97
  %271 = vmatprep.subr.mxu0 %v96
  %272 = vmatpush1.msra.mxu0 %v95
  %273 = vmatprep.subr.mxu0 %v94
  %274 = vmatpush1.msra.mxu0 %v93
  %275 = vmatprep.subr.mxu0 %v92
  %276 = vmatpush1.msra.mxu0 %v91
  %277 = vmatprep.subr.mxu0 %v90
  %278 = vmatpush1.msra.mxu0 %v89
  %279 = vmatprep.subr.mxu0 %v88
  %280 = vmatpush1.msra.mxu0 %v87
  %281 = vmatprep.subr.mxu0 %v86
  %282 = vmatpush1.msra.mxu0 %v85
  %283 = vmatprep.subr.mxu0 0.0
  %284 = vmatpush2.msra.mxu0 0.0
  %285 = vmatprep.subr.mxu0 0.0
  %286 = vmatpush2.msra.mxu0 0.0
  %287 = vmatprep.subr.mxu0 0.0
  %288 = vmatpush2.msra.mxu0 0.0
  %289 = vmatprep.subr.mxu0 0.0
  %290 = vmatpush2.msra.mxu0 0.0
  %291 = vmatprep.subr.mxu0 0.0
  %292 = vmatpush2.msra.mxu0 0.0
  %293 = vmatprep.subr.mxu0 0.0
  %294 = vmatpush2.msra.mxu0 0.0
  %295 = vmatprep.subr.mxu0 0.0
  %296 = vmatpush2.msra.mxu0 0.0
  %297 = vmatprep.subr.mxu0 0.0
  %298 = vmatpush2.msra.mxu0 0.0
  %299 = vmatprep.subr.mxu0 0.0
  %300 = vmatpush2.msra.mxu0 0.0
  %301 = vmatprep.subr.mxu0 0.0
  %302 = vmatpush2.msra.mxu0 0.0
  %303 = vmatprep.subr.mxu0 0.0
  %304 = vmatpush2.msra.mxu0 0.0
  %305 = vmatprep.subr.mxu0 0.0
  %306 = vmatpush2.msra.mxu0 0.0
  %307 = vmatprep.subr.mxu0 0.0
  %308 = vmatpush2.msra.mxu0 0.0
  %309 = vmatprep.subr.mxu0 0.0
  %310 = vmatpush2.msra.mxu0 0.0
  %311 = vmatprep.subr.mxu0 0.0
  %312 = vmatpush2.msra.mxu0 0.0
  %313 = vmatprep.subr.mxu0 0.0
  %314 = vmatpush2.msra.mxu0 0.0
  %315 = vmatprep.mubr.f32.mxu0 0.0
  %316 = vmatmul.mubr.f32.gmra.mxu0 %v179
  %v317 = vpop.f32.mrf.mxu0
  %v318 = vadd.f32 0.0, %v317
  %v319 = vpop.f32.mrf.mxu0
  %v320 = vadd.f32 0.0, %v319
  %321 = vdwg.mxu0
  %v324 = vcombine.low %v318, %v320
  %v326 = vsub.f32 %v103, %v324
  %vm327 = vcmask 130048
  %v329 = vsel %vm327, %v248, 0
  %331 = vmatprep.subr.mxu0 0.0
  %332 = vmatpush1.msra.mxu0 0.0
  %333 = vmatprep.subr.mxu0 0.0
  %334 = vmatpush1.msra.mxu0 0.0
  %335 = vmatprep.subr.mxu0 0.0
  %336 = vmatpush1.msra.mxu0 0.0
  %337 = vmatprep.subr.mxu0 0.0
  %338 = vmatpush1.msra.mxu0 0.0
  %339 = vmatprep.subr.mxu0 0.0
  %340 = vmatpush1.msra.mxu0 0.0
  %341 = vmatprep.subr.mxu0 0.0
  %342 = vmatpush1.msra.mxu0 0.0
  %343 = vmatprep.subr.mxu0 0.0
  %344 = vmatpush1.msra.mxu0 0.0
  %345 = vmatprep.subr.mxu0 0.0
  %346 = vmatpush1.msra.mxu0 0.0
  %347 = vmatprep.subr.mxu0 0.0
  %348 = vmatpush1.msra.mxu0 0.0
  %349 = vmatprep.subr.mxu0 0.0
  %350 = vmatpush1.msra.mxu0 0.0
  %351 = vmatprep.subr.mxu0 0.0
  %352 = vmatpush1.msra.mxu0 0.0
  %353 = vmatprep.subr.mxu0 0.0
  %354 = vmatpush1.msra.mxu0 0.0
  %355 = vmatprep.subr.mxu0 0.0
  %356 = vmatpush1.msra.mxu0 0.0
  %357 = vmatprep.subr.mxu0 0.0
  %358 = vmatpush1.msra.mxu0 0.0
  %359 = vmatprep.subr.mxu0 0.0
  %360 = vmatpush1.msra.mxu0 %v102
  %361 = vmatprep.subr.mxu0 0.0
  %362 = vmatpush1.msra.mxu0 %v101
  %363 = vmatprep.subr.mxu0 0.0
  %364 = vmatpush2.msra.mxu0 0.0
  %365 = vmatprep.subr.mxu0 0.0
  %366 = vmatpush2.msra.mxu0 0.0
  %367 = vmatprep.subr.mxu0 0.0
  %368 = vmatpush2.msra.mxu0 0.0
  %369 = vmatprep.subr.mxu0 0.0
  %370 = vmatpush2.msra.mxu0 0.0
  %371 = vmatprep.subr.mxu0 0.0
  %372 = vmatpush2.msra.mxu0 0.0
  %373 = vmatprep.subr.mxu0 0.0
  %374 = vmatpush2.msra.mxu0 0.0
  %375 = vmatprep.subr.mxu0 0.0
  %376 = vmatpush2.msra.mxu0 0.0
  %377 = vmatprep.subr.mxu0 0.0
  %378 = vmatpush2.msra.mxu0 0.0
  %379 = vmatprep.subr.mxu0 0.0
  %380 = vmatpush2.msra.mxu0 0.0
  %381 = vmatprep.subr.mxu0 0.0
  %382 = vmatpush2.msra.mxu0 0.0
  %383 = vmatprep.subr.mxu0 0.0
  %384 = vmatpush2.msra.mxu0 0.0
  %385 = vmatprep.subr.mxu0 0.0
  %386 = vmatpush2.msra.mxu0 0.0
  %387 = vmatprep.subr.mxu0 0.0
  %388 = vmatpush2.msra.mxu0 0.0
  %389 = vmatprep.subr.mxu0 0.0
  %390 = vmatpush2.msra.mxu0 0.0
  %391 = vmatprep.subr.mxu0 0.0
  %392 = vmatpush2.msra.mxu0 0.0
  %393 = vmatprep.subr.mxu0 0.0
  %394 = vmatpush2.msra.mxu0 0.0
  %395 = vmatprep.mubr.f32.mxu0 0.0
  %396 = vmatmul.mubr.f32.gmra.mxu0 %v329
  %v397 = vpop.f32.mrf.mxu0
  %v398 = vadd.f32 0.0, %v397
  %v399 = vpop.f32.mrf.mxu0
  %400 = vdwg.mxu0
  %v401 = vsub.f32 %v174, %v398
  %v403 = vcombine.high %v326, %v326
  %vm404 = vcmask 31744
  %v406 = vsel %vm404, %v38, 0
  %vm408 = vcmask 1043456
  %v409 = vsel %vm408, %v326, 0
  %v411 = vsel %vm408, %v403, 0
  %413 = vmatprep.subr.mxu0 0.0
  %414 = vmatpush1.msra.mxu0 0.0
  %415 = vmatprep.subr.mxu0 0.0
  %416 = vmatpush1.msra.mxu0 0.0
  %417 = vmatprep.subr.mxu0 0.0
  %418 = vmatpush1.msra.mxu0 0.0
  %419 = vmatprep.subr.mxu0 0.0
  %420 = vmatpush1.msra.mxu0 0.0
  %421 = vmatprep.subr.mxu0 0.0
  %422 = vmatpush1.msra.mxu0 0.0
  %423 = vmatprep.subr.mxu0 0.0
  %424 = vmatpush1.msra.mxu0 0.0
  %425 = vmatprep.subr.mxu0 0.0
  %426 = vmatpush1.msra.mxu0 0.0
  %427 = vmatprep.subr.mxu0 0.0
  %428 = vmatpush1.msra.mxu0 0.0
  %429 = vmatprep.subr.mxu0 0.0
  %430 = vmatpush1.msra.mxu0 0.0
  %431 = vmatprep.subr.mxu0 0.0
  %432 = vmatpush1.msra.mxu0 0.0
  %433 = vmatprep.subr.mxu0 0.0
  %434 = vmatpush1.msra.mxu0 0.0
  %435 = vmatprep.subr.mxu0 0.0
  %436 = vmatpush1.msra.mxu0 0.0
  %437 = vmatprep.subr.mxu0 0.0
  %438 = vmatpush1.msra.mxu0 0.0
  %439 = vmatprep.subr.mxu0 0.0
  %440 = vmatpush1.msra.mxu0 0.0
  %441 = vmatprep.subr.mxu0 0.0
  %442 = vmatpush1.msra.mxu0 0.0
  %443 = vmatprep.subr.mxu0 %v411
  %444 = vmatpush1.msra.mxu0 %v409
  %445 = vmatprep.subr.mxu0 0.0
  %446 = vmatpush2.msra.mxu0 0.0
  %447 = vmatprep.subr.mxu0 0.0
  %448 = vmatpush2.msra.mxu0 0.0
  %449 = vmatprep.subr.mxu0 0.0
  %450 = vmatpush2.msra.mxu0 0.0
  %451 = vmatprep.subr.mxu0 0.0
  %452 = vmatpush2.msra.mxu0 0.0
  %453 = vmatprep.subr.mxu0 0.0
  %454 = vmatpush2.msra.mxu0 0.0
  %455 = vmatprep.subr.mxu0 0.0
  %456 = vmatpush2.msra.mxu0 0.0
  %457 = vmatprep.subr.mxu0 0.0
  %458 = vmatpush2.msra.mxu0 0.0
  %459 = vmatprep.subr.mxu0 0.0
  %460 = vmatpush2.msra.mxu0 0.0
  %461 = vmatprep.subr.mxu0 0.0
  %462 = vmatpush2.msra.mxu0 0.0
  %463 = vmatprep.subr.mxu0 0.0
  %464 = vmatpush2.msra.mxu0 0.0
  %465 = vmatprep.subr.mxu0 0.0
  %466 = vmatpush2.msra.mxu0 0.0
  %467 = vmatprep.subr.mxu0 0.0
  %468 = vmatpush2.msra.mxu0 0.0
  %469 = vmatprep.subr.mxu0 0.0
  %470 = vmatpush2.msra.mxu0 0.0
  %471 = vmatprep.subr.mxu0 0.0
  %472 = vmatpush2.msra.mxu0 0.0
  %473 = vmatprep.subr.mxu0 0.0
  %474 = vmatpush2.msra.mxu0 0.0
  %475 = vmatprep.subr.mxu0 0.0
  %476 = vmatpush2.msra.mxu0 0.0
  %477 = vmatprep.mubr.f32.mxu0 0.0
  %478 = vmatmul.mubr.f32.gmra.mxu0 %v406
  %v479 = vpop.f32.mrf.mxu0
  %v480 = vadd.f32 0.0, %v479
  %v481 = vpop.f32.mrf.mxu0
  %v482 = vadd.f32 0.0, %v481
  %483 = vdwg.mxu0
  %v484 = vsub.f32 %v480, %v41
  %v485 = vsub.f32 %v482, %v42
  %v486 = vand.u32 2147483647, %v484
  %v487 = vand.u32 2147483647, %v485
  %v489 = vsel %vm404, %v39, 0
  %v492 = vsel %vm408, %v401, 0
  %494 = vmatprep.subr.mxu0 0.0
  %495 = vmatpush1.msra.mxu0 0.0
  %496 = vmatprep.subr.mxu0 0.0
  %497 = vmatpush1.msra.mxu0 0.0
  %498 = vmatprep.subr.mxu0 0.0
  %499 = vmatpush1.msra.mxu0 0.0
  %500 = vmatprep.subr.mxu0 0.0
  %501 = vmatpush1.msra.mxu0 0.0
  %502 = vmatprep.subr.mxu0 0.0
  %503 = vmatpush1.msra.mxu0 0.0
  %504 = vmatprep.subr.mxu0 0.0
  %505 = vmatpush1.msra.mxu0 0.0
  %506 = vmatprep.subr.mxu0 0.0
  %507 = vmatpush1.msra.mxu0 0.0
  %508 = vmatprep.subr.mxu0 0.0
  %509 = vmatpush1.msra.mxu0 0.0
  %510 = vmatprep.subr.mxu0 0.0
  %511 = vmatpush1.msra.mxu0 0.0
  %512 = vmatprep.subr.mxu0 0.0
  %513 = vmatpush1.msra.mxu0 0.0
  %514 = vmatprep.subr.mxu0 0.0
  %515 = vmatpush1.msra.mxu0 0.0
  %516 = vmatprep.subr.mxu0 0.0
  %517 = vmatpush1.msra.mxu0 0.0
  %518 = vmatprep.subr.mxu0 0.0
  %519 = vmatpush1.msra.mxu0 0.0
  %520 = vmatprep.subr.mxu0 0.0
  %521 = vmatpush1.msra.mxu0 0.0
  %522 = vmatprep.subr.mxu0 0.0
  %523 = vmatpush1.msra.mxu0 0.0
  %524 = vmatprep.subr.mxu0 0.0
  %525 = vmatpush1.msra.mxu0 %v492
  %526 = vmatprep.subr.mxu0 0.0
  %527 = vmatpush2.msra.mxu0 0.0
  %528 = vmatprep.subr.mxu0 0.0
  %529 = vmatpush2.msra.mxu0 0.0
  %530 = vmatprep.subr.mxu0 0.0
  %531 = vmatpush2.msra.mxu0 0.0
  %532 = vmatprep.subr.mxu0 0.0
  %533 = vmatpush2.msra.mxu0 0.0
  %534 = vmatprep.subr.mxu0 0.0
  %535 = vmatpush2.msra.mxu0 0.0
  %536 = vmatprep.subr.mxu0 0.0
  %537 = vmatpush2.msra.mxu0 0.0
  %538 = vmatprep.subr.mxu0 0.0
  %539 = vmatpush2.msra.mxu0 0.0
  %540 = vmatprep.subr.mxu0 0.0
  %541 = vmatpush2.msra.mxu0 0.0
  %542 = vmatprep.subr.mxu0 0.0
  %543 = vmatpush2.msra.mxu0 0.0
  %544 = vmatprep.subr.mxu0 0.0
  %545 = vmatpush2.msra.mxu0 0.0
  %546 = vmatprep.subr.mxu0 0.0
  %547 = vmatpush2.msra.mxu0 0.0
  %548 = vmatprep.subr.mxu0 0.0
  %549 = vmatpush2.msra.mxu0 0.0
  %550 = vmatprep.subr.mxu0 0.0
  %551 = vmatpush2.msra.mxu0 0.0
  %552 = vmatprep.subr.mxu0 0.0
  %553 = vmatpush2.msra.mxu0 0.0
  %554 = vmatprep.subr.mxu0 0.0
  %555 = vmatpush2.msra.mxu0 0.0
  %556 = vmatprep.subr.mxu0 0.0
  %557 = vmatpush2.msra.mxu0 0.0
  %558 = vmatprep.mubr.f32.mxu0 0.0
  %559 = vmatmul.mubr.f32.gmra.mxu0 %v489
  %v560 = vpop.f32.mrf.mxu0
  %v561 = vadd.f32 0.0, %v560
  %v562 = vpop.f32.mrf.mxu0
  %563 = vdwg.mxu0
  %v564 = vsub.f32 %v561, %v43
  %v565 = vand.u32 2147483647, %v564
  %v567 = vsel %vm404, %v40, 0
  %v569 = vsel %vm408, %v248, 0
  %571 = vmatprep.subr.mxu0 0.0
  %572 = vmatpush1.msra.mxu0 0.0
  %573 = vmatprep.subr.mxu0 0.0
  %574 = vmatpush1.msra.mxu0 0.0
  %575 = vmatprep.subr.mxu0 0.0
  %576 = vmatpush1.msra.mxu0 0.0
  %577 = vmatprep.subr.mxu0 0.0
  %578 = vmatpush1.msra.mxu0 0.0
  %579 = vmatprep.subr.mxu0 0.0
  %580 = vmatpush1.msra.mxu0 0.0
  %581 = vmatprep.subr.mxu0 0.0
  %582 = vmatpush1.msra.mxu0 0.0
  %583 = vmatprep.subr.mxu0 0.0
  %584 = vmatpush1.msra.mxu0 0.0
  %585 = vmatprep.subr.mxu0 0.0
  %586 = vmatpush1.msra.mxu0 0.0
  %587 = vmatprep.subr.mxu0 0.0
  %588 = vmatpush1.msra.mxu0 0.0
  %589 = vmatprep.subr.mxu0 0.0
  %590 = vmatpush1.msra.mxu0 0.0
  %591 = vmatprep.subr.mxu0 0.0
  %592 = vmatpush1.msra.mxu0 0.0
  %593 = vmatprep.subr.mxu0 0.0
  %594 = vmatpush1.msra.mxu0 0.0
  %595 = vmatprep.subr.mxu0 0.0
  %596 = vmatpush1.msra.mxu0 0.0
  %597 = vmatprep.subr.mxu0 0.0
  %598 = vmatpush1.msra.mxu0 0.0
  %599 = vmatprep.subr.mxu0 0.0
  %600 = vmatpush1.msra.mxu0 0.0
  %601 = vmatprep.subr.mxu0 0.0
  %602 = vmatpush1.msra.mxu0 %v569
  %603 = vmatprep.subr.mxu0 0.0
  %604 = vmatpush2.msra.mxu0 0.0
  %605 = vmatprep.subr.mxu0 0.0
  %606 = vmatpush2.msra.mxu0 0.0
  %607 = vmatprep.subr.mxu0 0.0
  %608 = vmatpush2.msra.mxu0 0.0
  %609 = vmatprep.subr.mxu0 0.0
  %610 = vmatpush2.msra.mxu0 0.0
  %611 = vmatprep.subr.mxu0 0.0
  %612 = vmatpush2.msra.mxu0 0.0
  %613 = vmatprep.subr.mxu0 0.0
  %614 = vmatpush2.msra.mxu0 0.0
  %615 = vmatprep.subr.mxu0 0.0
  %616 = vmatpush2.msra.mxu0 0.0
  %617 = vmatprep.subr.mxu0 0.0
  %618 = vmatpush2.msra.mxu0 0.0
  %619 = vmatprep.subr.mxu0 0.0
  %620 = vmatpush2.msra.mxu0 0.0
  %621 = vmatprep.subr.mxu0 0.0
  %622 = vmatpush2.msra.mxu0 0.0
  %623 = vmatprep.subr.mxu0 0.0
  %624 = vmatpush2.msra.mxu0 0.0
  %625 = vmatprep.subr.mxu0 0.0
  %626 = vmatpush2.msra.mxu0 0.0
  %627 = vmatprep.subr.mxu0 0.0
  %628 = vmatpush2.msra.mxu0 0.0
  %629 = vmatprep.subr.mxu0 0.0
  %630 = vmatpush2.msra.mxu0 0.0
  %631 = vmatprep.subr.mxu0 0.0
  %632 = vmatpush2.msra.mxu0 0.0
  %633 = vmatprep.subr.mxu0 0.0
  %634 = vmatpush2.msra.mxu0 0.0
  %635 = vmatprep.mubr.f32.mxu0 0.0
  %636 = vmatmul.mubr.f32.gmra.mxu0 %v567
  %v637 = vpop.f32.mrf.mxu0
  %v638 = vadd.f32 0.0, %v637
  %v639 = vpop.f32.mrf.mxu0
  %640 = vdwg.mxu0
  %v641 = vsub.f32 %v638, %v44
  %v642 = vand.u32 2147483647, %v641
  %v644 = vsel %vm327, %v642, 0
  %646 = vmatprep.subr.mxu0 0.0
  %647 = vmatpush1.msra.mxu0 0.0
  %648 = vmatprep.subr.mxu0 0.0
  %649 = vmatpush1.msra.mxu0 0.0
  %650 = vmatprep.subr.mxu0 0.0
  %651 = vmatpush1.msra.mxu0 0.0
  %652 = vmatprep.subr.mxu0 0.0
  %653 = vmatpush1.msra.mxu0 0.0
  %654 = vmatprep.subr.mxu0 0.0
  %655 = vmatpush1.msra.mxu0 0.0
  %656 = vmatprep.subr.mxu0 0.0
  %657 = vmatpush1.msra.mxu0 0.0
  %658 = vmatprep.subr.mxu0 0.0
  %659 = vmatpush1.msra.mxu0 0.0
  %660 = vmatprep.subr.mxu0 0.0
  %661 = vmatpush1.msra.mxu0 0.0
  %662 = vmatprep.subr.mxu0 0.0
  %663 = vmatpush1.msra.mxu0 0.0
  %664 = vmatprep.subr.mxu0 0.0
  %665 = vmatpush1.msra.mxu0 0.0
  %666 = vmatprep.subr.mxu0 0.0
  %667 = vmatpush1.msra.mxu0 0.0
  %668 = vmatprep.subr.mxu0 0.0
  %669 = vmatpush1.msra.mxu0 0.0
  %670 = vmatprep.subr.mxu0 0.0
  %671 = vmatpush1.msra.mxu0 0.0
  %672 = vmatprep.subr.mxu0 0.0
  %673 = vmatpush1.msra.mxu0 0.0
  %674 = vmatprep.subr.mxu0 0.0
  %675 = vmatpush1.msra.mxu0 %v102
  %676 = vmatprep.subr.mxu0 0.0
  %677 = vmatpush1.msra.mxu0 %v101
  %678 = vmatprep.subr.mxu0 0.0
  %679 = vmatpush2.msra.mxu0 0.0
  %680 = vmatprep.subr.mxu0 0.0
  %681 = vmatpush2.msra.mxu0 0.0
  %682 = vmatprep.subr.mxu0 0.0
  %683 = vmatpush2.msra.mxu0 0.0
  %684 = vmatprep.subr.mxu0 0.0
  %685 = vmatpush2.msra.mxu0 0.0
  %686 = vmatprep.subr.mxu0 0.0
  %687 = vmatpush2.msra.mxu0 0.0
  %688 = vmatprep.subr.mxu0 0.0
  %689 = vmatpush2.msra.mxu0 0.0
  %690 = vmatprep.subr.mxu0 0.0
  %691 = vmatpush2.msra.mxu0 0.0
  %692 = vmatprep.subr.mxu0 0.0
  %693 = vmatpush2.msra.mxu0 0.0
  %694 = vmatprep.subr.mxu0 0.0
  %695 = vmatpush2.msra.mxu0 0.0
  %696 = vmatprep.subr.mxu0 0.0
  %697 = vmatpush2.msra.mxu0 0.0
  %698 = vmatprep.subr.mxu0 0.0
  %699 = vmatpush2.msra.mxu0 0.0
  %700 = vmatprep.subr.mxu0 0.0
  %701 = vmatpush2.msra.mxu0 0.0
  %702 = vmatprep.subr.mxu0 0.0
  %703 = vmatpush2.msra.mxu0 0.0
  %704 = vmatprep.subr.mxu0 0.0
  %705 = vmatpush2.msra.mxu0 0.0
  %706 = vmatprep.subr.mxu0 0.0
  %707 = vmatpush2.msra.mxu0 0.0
  %708 = vmatprep.subr.mxu0 0.0
  %709 = vmatpush2.msra.mxu0 0.0
  %710 = vmatprep.mubr.f32.mxu0 0.0
  %711 = vmatmul.mubr.f32.gmra.mxu0 %v644
  %v712 = vpop.f32.mrf.mxu0
  %v713 = vadd.f32 %v565, %v712
  %v714 = vpop.f32.mrf.mxu0
  %715 = vdwg.mxu0
  %v717 = vsel %vm177, %v713, 0
  %719 = vmatprep.subr.mxu0 0.0
  %720 = vmatpush1.msra.mxu0 0.0
  %721 = vmatprep.subr.mxu0 0.0
  %722 = vmatpush1.msra.mxu0 0.0
  %723 = vmatprep.subr.mxu0 0.0
  %724 = vmatpush1.msra.mxu0 0.0
  %725 = vmatprep.subr.mxu0 0.0
  %726 = vmatpush1.msra.mxu0 0.0
  %727 = vmatprep.subr.mxu0 0.0
  %728 = vmatpush1.msra.mxu0 0.0
  %729 = vmatprep.subr.mxu0 0.0
  %730 = vmatpush1.msra.mxu0 0.0
  %731 = vmatprep.subr.mxu0 0.0
  %732 = vmatpush1.msra.mxu0 0.0
  %733 = vmatprep.subr.mxu0 0.0
  %734 = vmatpush1.msra.mxu0 0.0
  %735 = vmatprep.subr.mxu0 %v100
  %736 = vmatpush1.msra.mxu0 %v99
  %737 = vmatprep.subr.mxu0 %v98
  %738 = vmatpush1.msra.mxu0 %v97
  %739 = vmatprep.subr.mxu0 %v96
  %740 = vmatpush1.msra.mxu0 %v95
  %741 = vmatprep.subr.mxu0 %v94
  %742 = vmatpush1.msra.mxu0 %v93
  %743 = vmatprep.subr.mxu0 %v92
  %744 = vmatpush1.msra.mxu0 %v91
  %745 = vmatprep.subr.mxu0 %v90
  %746 = vmatpush1.msra.mxu0 %v89
  %747 = vmatprep.subr.mxu0 %v88
  %748 = vmatpush1.msra.mxu0 %v87
  %749 = vmatprep.subr.mxu0 %v86
  %750 = vmatpush1.msra.mxu0 %v85
  %751 = vmatprep.subr.mxu0 0.0
  %752 = vmatpush2.msra.mxu0 0.0
  %753 = vmatprep.subr.mxu0 0.0
  %754 = vmatpush2.msra.mxu0 0.0
  %755 = vmatprep.subr.mxu0 0.0
  %756 = vmatpush2.msra.mxu0 0.0
  %757 = vmatprep.subr.mxu0 0.0
  %758 = vmatpush2.msra.mxu0 0.0
  %759 = vmatprep.subr.mxu0 0.0
  %760 = vmatpush2.msra.mxu0 0.0
  %761 = vmatprep.subr.mxu0 0.0
  %762 = vmatpush2.msra.mxu0 0.0
  %763 = vmatprep.subr.mxu0 0.0
  %764 = vmatpush2.msra.mxu0 0.0
  %765 = vmatprep.subr.mxu0 0.0
  %766 = vmatpush2.msra.mxu0 0.0
  %767 = vmatprep.subr.mxu0 0.0
  %768 = vmatpush2.msra.mxu0 0.0
  %769 = vmatprep.subr.mxu0 0.0
  %770 = vmatpush2.msra.mxu0 0.0
  %771 = vmatprep.subr.mxu0 0.0
  %772 = vmatpush2.msra.mxu0 0.0
  %773 = vmatprep.subr.mxu0 0.0
  %774 = vmatpush2.msra.mxu0 0.0
  %775 = vmatprep.subr.mxu0 0.0
  %776 = vmatpush2.msra.mxu0 0.0
  %777 = vmatprep.subr.mxu0 0.0
  %778 = vmatpush2.msra.mxu0 0.0
  %779 = vmatprep.subr.mxu0 0.0
  %780 = vmatpush2.msra.mxu0 0.0
  %781 = vmatprep.subr.mxu0 0.0
  %782 = vmatpush2.msra.mxu0 0.0
  %783 = vmatprep.mubr.f32.mxu0 0.0
  %784 = vmatmul.mubr.f32.gmra.mxu0 %v717
  %v785 = vpop.f32.mrf.mxu0
  %v786 = vadd.f32 %v486, %v785
  %v787 = vpop.f32.mrf.mxu0
  %v788 = vadd.f32 %v487, %v787
  %789 = vdwg.mxu0
  %v790 = vrot.slane %v786, 4
  %v791 = vadd.f32 %v786, %v790
  %v792 = vrot.slane %v791, 2
  %v793 = vadd.f32 %v791, %v792
  %v794 = vrot.slane %v793, 1
  %v795 = vadd.f32 %v793, %v794
  %v796 = vrot.slane %v788, 4
  %v797 = vadd.f32 %v788, %v796
  %v798 = vrot.slane %v797, 2
  %v799 = vadd.f32 %v797, %v798
  %v800 = vrot.slane %v799, 1
  %v801 = vadd.f32 %v799, %v800
  %v802 = vmul.f32 %v795, 0.125
  %v803 = vmul.f32 %v801, 0.125
  %s804 = scalar_lea.vmem %s0, 8
  %v805 = vld [vmem:[%s804] sm:$0xff]
  %v807 = vcombine.high %v805, %v805
  %809 = vmatprep.subr.mxu0 0.0
  %810 = vmatpush1.msra.mxu0 %v60
  %811 = vmatprep.subr.mxu0 0.0
  %812 = vmatpush1.msra.mxu0 %v59
  %813 = vmatprep.subr.mxu0 0.0
  %814 = vmatpush1.msra.mxu0 %v58
  %815 = vmatprep.subr.mxu0 0.0
  %816 = vmatpush1.msra.mxu0 %v57
  %817 = vmatprep.subr.mxu0 0.0
  %818 = vmatpush1.msra.mxu0 %v56
  %819 = vmatprep.subr.mxu0 0.0
  %820 = vmatpush1.msra.mxu0 %v55
  %821 = vmatprep.subr.mxu0 0.0
  %822 = vmatpush1.msra.mxu0 %v54
  %823 = vmatprep.subr.mxu0 0.0
  %824 = vmatpush1.msra.mxu0 %v53
  %825 = vmatprep.subr.mxu0 0.0
  %826 = vmatpush1.msra.mxu0 %v52
  %827 = vmatprep.subr.mxu0 0.0
  %828 = vmatpush1.msra.mxu0 %v51
  %829 = vmatprep.subr.mxu0 0.0
  %830 = vmatpush1.msra.mxu0 %v50
  %831 = vmatprep.subr.mxu0 0.0
  %832 = vmatpush1.msra.mxu0 %v49
  %833 = vmatprep.subr.mxu0 0.0
  %834 = vmatpush1.msra.mxu0 %v48
  %835 = vmatprep.subr.mxu0 0.0
  %836 = vmatpush1.msra.mxu0 %v47
  %837 = vmatprep.subr.mxu0 0.0
  %838 = vmatpush1.msra.mxu0 %v46
  %839 = vmatprep.subr.mxu0 0.0
  %840 = vmatpush1.msra.mxu0 %v45
  %841 = vmatprep.subr.mxu0 0.0
  %842 = vmatpush2.msra.mxu0 %v76
  %843 = vmatprep.subr.mxu0 0.0
  %844 = vmatpush2.msra.mxu0 %v75
  %845 = vmatprep.subr.mxu0 0.0
  %846 = vmatpush2.msra.mxu0 %v74
  %847 = vmatprep.subr.mxu0 0.0
  %848 = vmatpush2.msra.mxu0 %v73
  %849 = vmatprep.subr.mxu0 0.0
  %850 = vmatpush2.msra.mxu0 %v72
  %851 = vmatprep.subr.mxu0 0.0
  %852 = vmatpush2.msra.mxu0 %v71
  %853 = vmatprep.subr.mxu0 0.0
  %854 = vmatpush2.msra.mxu0 %v70
  %855 = vmatprep.subr.mxu0 0.0
  %856 = vmatpush2.msra.mxu0 %v69
  %857 = vmatprep.subr.mxu0 0.0
  %858 = vmatpush2.msra.mxu0 %v68
  %859 = vmatprep.subr.mxu0 0.0
  %860 = vmatpush2.msra.mxu0 %v67
  %861 = vmatprep.subr.mxu0 0.0
  %862 = vmatpush2.msra.mxu0 %v66
  %863 = vmatprep.subr.mxu0 0.0
  %864 = vmatpush2.msra.mxu0 %v65
  %865 = vmatprep.subr.mxu0 0.0
  %866 = vmatpush2.msra.mxu0 %v64
  %867 = vmatprep.subr.mxu0 0.0
  %868 = vmatpush2.msra.mxu0 %v63
  %869 = vmatprep.subr.mxu0 0.0
  %870 = vmatpush2.msra.mxu0 %v62
  %871 = vmatprep.subr.mxu0 0.0
  %872 = vmatpush2.msra.mxu0 %v61
  %873 = vmatprep.mubr.f32.mxu0 %v807
  %874 = vmatmul.mubr.f32.gmra.mxu0 %v805
  %v875 = vpop.f32.mrf.mxu0
  %v876 = vadd.f32 0.0, %v875
  %v877 = vpop.f32.mrf.mxu0
  %878 = vdwg.mxu0
  %v880 = vsel %vm177, %v876, 0
  %882 = vmatprep.subr.mxu0 0.0
  %883 = vmatpush1.msra.mxu0 0.0
  %884 = vmatprep.subr.mxu0 0.0
  %885 = vmatpush1.msra.mxu0 0.0
  %886 = vmatprep.subr.mxu0 0.0
  %887 = vmatpush1.msra.mxu0 0.0
  %888 = vmatprep.subr.mxu0 0.0
  %889 = vmatpush1.msra.mxu0 0.0
  %890 = vmatprep.subr.mxu0 0.0
  %891 = vmatpush1.msra.mxu0 0.0
  %892 = vmatprep.subr.mxu0 0.0
  %893 = vmatpush1.msra.mxu0 0.0
  %894 = vmatprep.subr.mxu0 0.0
  %895 = vmatpush1.msra.mxu0 0.0
  %896 = vmatprep.subr.mxu0 0.0
  %897 = vmatpush1.msra.mxu0 0.0
  %898 = vmatprep.subr.mxu0 0.0
  %899 = vmatpush1.msra.mxu0 %v84
  %900 = vmatprep.subr.mxu0 0.0
  %901 = vmatpush1.msra.mxu0 %v83
  %902 = vmatprep.subr.mxu0 0.0
  %903 = vmatpush1.msra.mxu0 %v82
  %904 = vmatprep.subr.mxu0 0.0
  %905 = vmatpush1.msra.mxu0 %v81
  %906 = vmatprep.subr.mxu0 0.0
  %907 = vmatpush1.msra.mxu0 %v80
  %908 = vmatprep.subr.mxu0 0.0
  %909 = vmatpush1.msra.mxu0 %v79
  %910 = vmatprep.subr.mxu0 0.0
  %911 = vmatpush1.msra.mxu0 %v78
  %912 = vmatprep.subr.mxu0 0.0
  %913 = vmatpush1.msra.mxu0 %v77
  %914 = vmatprep.subr.mxu0 0.0
  %915 = vmatpush2.msra.mxu0 0.0
  %916 = vmatprep.subr.mxu0 0.0
  %917 = vmatpush2.msra.mxu0 0.0
  %918 = vmatprep.subr.mxu0 0.0
  %919 = vmatpush2.msra.mxu0 0.0
  %920 = vmatprep.subr.mxu0 0.0
  %921 = vmatpush2.msra.mxu0 0.0
  %922 = vmatprep.subr.mxu0 0.0
  %923 = vmatpush2.msra.mxu0 0.0
  %924 = vmatprep.subr.mxu0 0.0
  %925 = vmatpush2.msra.mxu0 0.0
  %926 = vmatprep.subr.mxu0 0.0
  %927 = vmatpush2.msra.mxu0 0.0
  %928 = vmatprep.subr.mxu0 0.0
  %929 = vmatpush2.msra.mxu0 0.0
  %930 = vmatprep.subr.mxu0 0.0
  %931 = vmatpush2.msra.mxu0 0.0
  %932 = vmatprep.subr.mxu0 0.0
  %933 = vmatpush2.msra.mxu0 0.0
  %934 = vmatprep.subr.mxu0 0.0
  %935 = vmatpush2.msra.mxu0 0.0
  %936 = vmatprep.subr.mxu0 0.0
  %937 = vmatpush2.msra.mxu0 0.0
  %938 = vmatprep.subr.mxu0 0.0
  %939 = vmatpush2.msra.mxu0 0.0
  %940 = vmatprep.subr.mxu0 0.0
  %941 = vmatpush2.msra.mxu0 0.0
  %942 = vmatprep.subr.mxu0 0.0
  %943 = vmatpush2.msra.mxu0 0.0
  %944 = vmatprep.subr.mxu0 0.0
  %945 = vmatpush2.msra.mxu0 0.0
  %946 = vmatprep.mubr.f32.mxu0 0.0
  %947 = vmatmul.mubr.f32.gmra.mxu0 %v880
  %v948 = vpop.f32.mrf.mxu0
  %v949 = vadd.f32 0.0, %v948
  %v950 = vpop.f32.mrf.mxu0
  %951 = vdwg.mxu0
  %952 = vmatprep.subr.mxu0 0.0
  %953 = vmatpush1.msra.mxu0 0.0
  %954 = vmatprep.subr.mxu0 0.0
  %955 = vmatpush1.msra.mxu0 0.0
  %956 = vmatprep.subr.mxu0 0.0
  %957 = vmatpush1.msra.mxu0 0.0
  %958 = vmatprep.subr.mxu0 0.0
  %959 = vmatpush1.msra.mxu0 0.0
  %960 = vmatprep.subr.mxu0 0.0
  %961 = vmatpush1.msra.mxu0 0.0
  %962 = vmatprep.subr.mxu0 0.0
  %963 = vmatpush1.msra.mxu0 0.0
  %964 = vmatprep.subr.mxu0 0.0
  %965 = vmatpush1.msra.mxu0 0.0
  %966 = vmatprep.subr.mxu0 0.0
  %967 = vmatpush1.msra.mxu0 0.0
  %968 = vmatprep.subr.mxu0 %v100
  %969 = vmatpush1.msra.mxu0 %v99
  %970 = vmatprep.subr.mxu0 %v98
  %971 = vmatpush1.msra.mxu0 %v97
  %972 = vmatprep.subr.mxu0 %v96
  %973 = vmatpush1.msra.mxu0 %v95
  %974 = vmatprep.subr.mxu0 %v94
  %975 = vmatpush1.msra.mxu0 %v93
  %976 = vmatprep.subr.mxu0 %v92
  %977 = vmatpush1.msra.mxu0 %v91
  %978 = vmatprep.subr.mxu0 %v90
  %979 = vmatpush1.msra.mxu0 %v89
  %980 = vmatprep.subr.mxu0 %v88
  %981 = vmatpush1.msra.mxu0 %v87
  %982 = vmatprep.subr.mxu0 %v86
  %983 = vmatpush1.msra.mxu0 %v85
  %984 = vmatprep.subr.mxu0 0.0
  %985 = vmatpush2.msra.mxu0 0.0
  %986 = vmatprep.subr.mxu0 0.0
  %987 = vmatpush2.msra.mxu0 0.0
  %988 = vmatprep.subr.mxu0 0.0
  %989 = vmatpush2.msra.mxu0 0.0
  %990 = vmatprep.subr.mxu0 0.0
  %991 = vmatpush2.msra.mxu0 0.0
  %992 = vmatprep.subr.mxu0 0.0
  %993 = vmatpush2.msra.mxu0 0.0
  %994 = vmatprep.subr.mxu0 0.0
  %995 = vmatpush2.msra.mxu0 0.0
  %996 = vmatprep.subr.mxu0 0.0
  %997 = vmatpush2.msra.mxu0 0.0
  %998 = vmatprep.subr.mxu0 0.0
  %999 = vmatpush2.msra.mxu0 0.0
  %1000 = vmatprep.subr.mxu0 0.0
  %1001 = vmatpush2.msra.mxu0 0.0
  %1002 = vmatprep.subr.mxu0 0.0
  %1003 = vmatpush2.msra.mxu0 0.0
  %1004 = vmatprep.subr.mxu0 0.0
  %1005 = vmatpush2.msra.mxu0 0.0
  %1006 = vmatprep.subr.mxu0 0.0
  %1007 = vmatpush2.msra.mxu0 0.0
  %1008 = vmatprep.subr.mxu0 0.0
  %1009 = vmatpush2.msra.mxu0 0.0
  %1010 = vmatprep.subr.mxu0 0.0
  %1011 = vmatpush2.msra.mxu0 0.0
  %1012 = vmatprep.subr.mxu0 0.0
  %1013 = vmatpush2.msra.mxu0 0.0
  %1014 = vmatprep.subr.mxu0 0.0
  %1015 = vmatpush2.msra.mxu0 0.0
  %1016 = vmatprep.mubr.f32.mxu0 0.0
  %1017 = vmatmul.mubr.f32.gmra.mxu0 %v880
  %v1018 = vpop.f32.mrf.mxu0
  %v1019 = vadd.f32 0.0, %v1018
  %v1020 = vpop.f32.mrf.mxu0
  %v1021 = vadd.f32 0.0, %v1020
  %1022 = vdwg.mxu0
  %v1025 = vcombine.low %v1019, %v1021
  %v1027 = vsub.f32 %v805, %v1025
  %v1029 = vsel %vm327, %v949, 0
  %1031 = vmatprep.subr.mxu0 0.0
  %1032 = vmatpush1.msra.mxu0 0.0
  %1033 = vmatprep.subr.mxu0 0.0
  %1034 = vmatpush1.msra.mxu0 0.0
  %1035 = vmatprep.subr.mxu0 0.0
  %1036 = vmatpush1.msra.mxu0 0.0
  %1037 = vmatprep.subr.mxu0 0.0
  %1038 = vmatpush1.msra.mxu0 0.0
  %1039 = vmatprep.subr.mxu0 0.0
  %1040 = vmatpush1.msra.mxu0 0.0
  %1041 = vmatprep.subr.mxu0 0.0
  %1042 = vmatpush1.msra.mxu0 0.0
  %1043 = vmatprep.subr.mxu0 0.0
  %1044 = vmatpush1.msra.mxu0 0.0
  %1045 = vmatprep.subr.mxu0 0.0
  %1046 = vmatpush1.msra.mxu0 0.0
  %1047 = vmatprep.subr.mxu0 0.0
  %1048 = vmatpush1.msra.mxu0 0.0
  %1049 = vmatprep.subr.mxu0 0.0
  %1050 = vmatpush1.msra.mxu0 0.0
  %1051 = vmatprep.subr.mxu0 0.0
  %1052 = vmatpush1.msra.mxu0 0.0
  %1053 = vmatprep.subr.mxu0 0.0
  %1054 = vmatpush1.msra.mxu0 0.0
  %1055 = vmatprep.subr.mxu0 0.0
  %1056 = vmatpush1.msra.mxu0 0.0
  %1057 = vmatprep.subr.mxu0 0.0
  %1058 = vmatpush1.msra.mxu0 0.0
  %1059 = vmatprep.subr.mxu0 0.0
  %1060 = vmatpush1.msra.mxu0 %v102
  %1061 = vmatprep.subr.mxu0 0.0
  %1062 = vmatpush1.msra.mxu0 %v101
  %1063 = vmatprep.subr.mxu0 0.0
  %1064 = vmatpush2.msra.mxu0 0.0
  %1065 = vmatprep.subr.mxu0 0.0
  %1066 = vmatpush2.msra.mxu0 0.0
  %1067 = vmatprep.subr.mxu0 0.0
  %1068 = vmatpush2.msra.mxu0 0.0
  %1069 = vmatprep.subr.mxu0 0.0
  %1070 = vmatpush2.msra.mxu0 0.0
  %1071 = vmatprep.subr.mxu0 0.0
  %1072 = vmatpush2.msra.mxu0 0.0
  %1073 = vmatprep.subr.mxu0 0.0
  %1074 = vmatpush2.msra.mxu0 0.0
  %1075 = vmatprep.subr.mxu0 0.0
  %1076 = vmatpush2.msra.mxu0 0.0
  %1077 = vmatprep.subr.mxu0 0.0
  %1078 = vmatpush2.msra.mxu0 0.0
  %1079 = vmatprep.subr.mxu0 0.0
  %1080 = vmatpush2.msra.mxu0 0.0
  %1081 = vmatprep.subr.mxu0 0.0
  %1082 = vmatpush2.msra.mxu0 0.0
  %1083 = vmatprep.subr.mxu0 0.0
  %1084 = vmatpush2.msra.mxu0 0.0
  %1085 = vmatprep.subr.mxu0 0.0
  %1086 = vmatpush2.msra.mxu0 0.0
  %1087 = vmatprep.subr.mxu0 0.0
  %1088 = vmatpush2.msra.mxu0 0.0
  %1089 = vmatprep.subr.mxu0 0.0
  %1090 = vmatpush2.msra.mxu0 0.0
  %1091 = vmatprep.subr.mxu0 0.0
  %1092 = vmatpush2.msra.mxu0 0.0
  %1093 = vmatprep.subr.mxu0 0.0
  %1094 = vmatpush2.msra.mxu0 0.0
  %1095 = vmatprep.mubr.f32.mxu0 0.0
  %1096 = vmatmul.mubr.f32.gmra.mxu0 %v1029
  %v1097 = vpop.f32.mrf.mxu0
  %v1098 = vadd.f32 0.0, %v1097
  %v1099 = vpop.f32.mrf.mxu0
  %1100 = vdwg.mxu0
  %v1101 = vsub.f32 %v876, %v1098
  %v1103 = vcombine.high %v1027, %v1027
  %v1104 = vsel %vm408, %v1027, 0
  %v1106 = vsel %vm408, %v1103, 0
  %1108 = vmatprep.subr.mxu0 0.0
  %1109 = vmatpush1.msra.mxu0 0.0
  %1110 = vmatprep.subr.mxu0 0.0
  %1111 = vmatpush1.msra.mxu0 0.0
  %1112 = vmatprep.subr.mxu0 0.0
  %1113 = vmatpush1.msra.mxu0 0.0
  %1114 = vmatprep.subr.mxu0 0.0
  %1115 = vmatpush1.msra.mxu0 0.0
  %1116 = vmatprep.subr.mxu0 0.0
  %1117 = vmatpush1.msra.mxu0 0.0
  %1118 = vmatprep.subr.mxu0 0.0
  %1119 = vmatpush1.msra.mxu0 0.0
  %1120 = vmatprep.subr.mxu0 0.0
  %1121 = vmatpush1.msra.mxu0 0.0
  %1122 = vmatprep.subr.mxu0 0.0
  %1123 = vmatpush1.msra.mxu0 0.0
  %1124 = vmatprep.subr.mxu0 0.0
  %1125 = vmatpush1.msra.mxu0 0.0
  %1126 = vmatprep.subr.mxu0 0.0
  %1127 = vmatpush1.msra.mxu0 0.0
  %1128 = vmatprep.subr.mxu0 0.0
  %1129 = vmatpush1.msra.mxu0 0.0
  %1130 = vmatprep.subr.mxu0 0.0
  %1131 = vmatpush1.msra.mxu0 0.0
  %1132 = vmatprep.subr.mxu0 0.0
  %1133 = vmatpush1.msra.mxu0 0.0
  %1134 = vmatprep.subr.mxu0 0.0
  %1135 = vmatpush1.msra.mxu0 0.0
  %1136 = vmatprep.subr.mxu0 0.0
  %1137 = vmatpush1.msra.mxu0 0.0
  %1138 = vmatprep.subr.mxu0 %v1106
  %1139 = vmatpush1.msra.mxu0 %v1104
  %1140 = vmatprep.subr.mxu0 0.0
  %1141 = vmatpush2.msra.mxu0 0.0
  %1142 = vmatprep.subr.mxu0 0.0
  %1143 = vmatpush2.msra.mxu0 0.0
  %1144 = vmatprep.subr.mxu0 0.0
  %1145 = vmatpush2.msra.mxu0 0.0
  %1146 = vmatprep.subr.mxu0 0.0
  %1147 = vmatpush2.msra.mxu0 0.0
  %1148 = vmatprep.subr.mxu0 0.0
  %1149 = vmatpush2.msra.mxu0 0.0
  %1150 = vmatprep.subr.mxu0 0.0
  %1151 = vmatpush2.msra.mxu0 0.0
  %1152 = vmatprep.subr.mxu0 0.0
  %1153 = vmatpush2.msra.mxu0 0.0
  %1154 = vmatprep.subr.mxu0 0.0
  %1155 = vmatpush2.msra.mxu0 0.0
  %1156 = vmatprep.subr.mxu0 0.0
  %1157 = vmatpush2.msra.mxu0 0.0
  %1158 = vmatprep.subr.mxu0 0.0
  %1159 = vmatpush2.msra.mxu0 0.0
  %1160 = vmatprep.subr.mxu0 0.0
  %1161 = vmatpush2.msra.mxu0 0.0
  %1162 = vmatprep.subr.mxu0 0.0
  %1163 = vmatpush2.msra.mxu0 0.0
  %1164 = vmatprep.subr.mxu0 0.0
  %1165 = vmatpush2.msra.mxu0 0.0
  %1166 = vmatprep.subr.mxu0 0.0
  %1167 = vmatpush2.msra.mxu0 0.0
  %1168 = vmatprep.subr.mxu0 0.0
  %1169 = vmatpush2.msra.mxu0 0.0
  %1170 = vmatprep.subr.mxu0 0.0
  %1171 = vmatpush2.msra.mxu0 0.0
  %1172 = vmatprep.mubr.f32.mxu0 0.0
  %1173 = vmatmul.mubr.f32.gmra.mxu0 %v406
  %v1174 = vpop.f32.mrf.mxu0
  %v1175 = vadd.f32 0.0, %v1174
  %v1176 = vpop.f32.mrf.mxu0
  %v1177 = vadd.f32 0.0, %v1176
  %1178 = vdwg.mxu0
  %v1179 = vsub.f32 %v1175, %v41
  %v1180 = vsub.f32 %v1177, %v42
  %v1181 = vand.u32 2147483647, %v1179
  %v1182 = vand.u32 2147483647, %v1180
  %v1184 = vsel %vm408, %v1101, 0
  %1186 = vmatprep.subr.mxu0 0.0
  %1187 = vmatpush1.msra.mxu0 0.0
  %1188 = vmatprep.subr.mxu0 0.0
  %1189 = vmatpush1.msra.mxu0 0.0
  %1190 = vmatprep.subr.mxu0 0.0
  %1191 = vmatpush1.msra.mxu0 0.0
  %1192 = vmatprep.subr.mxu0 0.0
  %1193 = vmatpush1.msra.mxu0 0.0
  %1194 = vmatprep.subr.mxu0 0.0
  %1195 = vmatpush1.msra.mxu0 0.0
  %1196 = vmatprep.subr.mxu0 0.0
  %1197 = vmatpush1.msra.mxu0 0.0
  %1198 = vmatprep.subr.mxu0 0.0
  %1199 = vmatpush1.msra.mxu0 0.0
  %1200 = vmatprep.subr.mxu0 0.0
  %1201 = vmatpush1.msra.mxu0 0.0
  %1202 = vmatprep.subr.mxu0 0.0
  %1203 = vmatpush1.msra.mxu0 0.0
  %1204 = vmatprep.subr.mxu0 0.0
  %1205 = vmatpush1.msra.mxu0 0.0
  %1206 = vmatprep.subr.mxu0 0.0
  %1207 = vmatpush1.msra.mxu0 0.0
  %1208 = vmatprep.subr.mxu0 0.0
  %1209 = vmatpush1.msra.mxu0 0.0
  %1210 = vmatprep.subr.mxu0 0.0
  %1211 = vmatpush1.msra.mxu0 0.0
  %1212 = vmatprep.subr.mxu0 0.0
  %1213 = vmatpush1.msra.mxu0 0.0
  %1214 = vmatprep.subr.mxu0 0.0
  %1215 = vmatpush1.msra.mxu0 0.0
  %1216 = vmatprep.subr.mxu0 0.0
  %1217 = vmatpush1.msra.mxu0 %v1184
  %1218 = vmatprep.subr.mxu0 0.0
  %1219 = vmatpush2.msra.mxu0 0.0
  %1220 = vmatprep.subr.mxu0 0.0
  %1221 = vmatpush2.msra.mxu0 0.0
  %1222 = vmatprep.subr.mxu0 0.0
  %1223 = vmatpush2.msra.mxu0 0.0
  %1224 = vmatprep.subr.mxu0 0.0
  %1225 = vmatpush2.msra.mxu0 0.0
  %1226 = vmatprep.subr.mxu0 0.0
  %1227 = vmatpush2.msra.mxu0 0.0
  %1228 = vmatprep.subr.mxu0 0.0
  %1229 = vmatpush2.msra.mxu0 0.0
  %1230 = vmatprep.subr.mxu0 0.0
  %1231 = vmatpush2.msra.mxu0 0.0
  %1232 = vmatprep.subr.mxu0 0.0
  %1233 = vmatpush2.msra.mxu0 0.0
  %1234 = vmatprep.subr.mxu0 0.0
  %1235 = vmatpush2.msra.mxu0 0.0
  %1236 = vmatprep.subr.mxu0 0.0
  %1237 = vmatpush2.msra.mxu0 0.0
  %1238 = vmatprep.subr.mxu0 0.0
  %1239 = vmatpush2.msra.mxu0 0.0
  %1240 = vmatprep.subr.mxu0 0.0
  %1241 = vmatpush2.msra.mxu0 0.0
  %1242 = vmatprep.subr.mxu0 0.0
  %1243 = vmatpush2.msra.mxu0 0.0
  %1244 = vmatprep.subr.mxu0 0.0
  %1245 = vmatpush2.msra.mxu0 0.0
  %1246 = vmatprep.subr.mxu0 0.0
  %1247 = vmatpush2.msra.mxu0 0.0
  %1248 = vmatprep.subr.mxu0 0.0
  %1249 = vmatpush2.msra.mxu0 0.0
  %1250 = vmatprep.mubr.f32.mxu0 0.0
  %1251 = vmatmul.mubr.f32.gmra.mxu0 %v489
  %v1252 = vpop.f32.mrf.mxu0
  %v1253 = vadd.f32 0.0, %v1252
  %v1254 = vpop.f32.mrf.mxu0
  %1255 = vdwg.mxu0
  %v1256 = vsub.f32 %v1253, %v43
  %v1257 = vand.u32 2147483647, %v1256
  %v1258 = vsel %vm408, %v949, 0
  %1260 = vmatprep.subr.mxu0 0.0
  %1261 = vmatpush1.msra.mxu0 0.0
  %1262 = vmatprep.subr.mxu0 0.0
  %1263 = vmatpush1.msra.mxu0 0.0
  %1264 = vmatprep.subr.mxu0 0.0
  %1265 = vmatpush1.msra.mxu0 0.0
  %1266 = vmatprep.subr.mxu0 0.0
  %1267 = vmatpush1.msra.mxu0 0.0
  %1268 = vmatprep.subr.mxu0 0.0
  %1269 = vmatpush1.msra.mxu0 0.0
  %1270 = vmatprep.subr.mxu0 0.0
  %1271 = vmatpush1.msra.mxu0 0.0
  %1272 = vmatprep.subr.mxu0 0.0
  %1273 = vmatpush1.msra.mxu0 0.0
  %1274 = vmatprep.subr.mxu0 0.0
  %1275 = vmatpush1.msra.mxu0 0.0
  %1276 = vmatprep.subr.mxu0 0.0
  %1277 = vmatpush1.msra.mxu0 0.0
  %1278 = vmatprep.subr.mxu0 0.0
  %1279 = vmatpush1.msra.mxu0 0.0
  %1280 = vmatprep.subr.mxu0 0.0
  %1281 = vmatpush1.msra.mxu0 0.0
  %1282 = vmatprep.subr.mxu0 0.0
  %1283 = vmatpush1.msra.mxu0 0.0
  %1284 = vmatprep.subr.mxu0 0.0
  %1285 = vmatpush1.msra.mxu0 0.0
  %1286 = vmatprep.subr.mxu0 0.0
  %1287 = vmatpush1.msra.mxu0 0.0
  %1288 = vmatprep.subr.mxu0 0.0
  %1289 = vmatpush1.msra.mxu0 0.0
  %1290 = vmatprep.subr.mxu0 0.0
  %1291 = vmatpush1.msra.mxu0 %v1258
  %1292 = vmatprep.subr.mxu0 0.0
  %1293 = vmatpush2.msra.mxu0 0.0
  %1294 = vmatprep.subr.mxu0 0.0
  %1295 = vmatpush2.msra.mxu0 0.0
  %1296 = vmatprep.subr.mxu0 0.0
  %1297 = vmatpush2.msra.mxu0 0.0
  %1298 = vmatprep.subr.mxu0 0.0
  %1299 = vmatpush2.msra.mxu0 0.0
  %1300 = vmatprep.subr.mxu0 0.0
  %1301 = vmatpush2.msra.mxu0 0.0
  %1302 = vmatprep.subr.mxu0 0.0
  %1303 = vmatpush2.msra.mxu0 0.0
  %1304 = vmatprep.subr.mxu0 0.0
  %1305 = vmatpush2.msra.mxu0 0.0
  %1306 = vmatprep.subr.mxu0 0.0
  %1307 = vmatpush2.msra.mxu0 0.0
  %1308 = vmatprep.subr.mxu0 0.0
  %1309 = vmatpush2.msra.mxu0 0.0
  %1310 = vmatprep.subr.mxu0 0.0
  %1311 = vmatpush2.msra.mxu0 0.0
  %1312 = vmatprep.subr.mxu0 0.0
  %1313 = vmatpush2.msra.mxu0 0.0
  %1314 = vmatprep.subr.mxu0 0.0
  %1315 = vmatpush2.msra.mxu0 0.0
  %1316 = vmatprep.subr.mxu0 0.0
  %1317 = vmatpush2.msra.mxu0 0.0
  %1318 = vmatprep.subr.mxu0 0.0
  %1319 = vmatpush2.msra.mxu0 0.0
  %1320 = vmatprep.subr.mxu0 0.0
  %1321 = vmatpush2.msra.mxu0 0.0
  %1322 = vmatprep.subr.mxu0 0.0
  %1323 = vmatpush2.msra.mxu0 0.0
  %1324 = vmatprep.mubr.f32.mxu0 0.0
  %1325 = vmatmul.mubr.f32.gmra.mxu0 %v567
  %v1326 = vpop.f32.mrf.mxu0
  %v1327 = vadd.f32 0.0, %v1326
  %v1328 = vpop.f32.mrf.mxu0
  %1329 = vdwg.mxu0
  %v1330 = vsub.f32 %v1327, %v44
  %v1331 = vand.u32 2147483647, %v1330
  %v1333 = vsel %vm327, %v1331, 0
  %1335 = vmatprep.subr.mxu0 0.0
  %1336 = vmatpush1.msra.mxu0 0.0
  %1337 = vmatprep.subr.mxu0 0.0
  %1338 = vmatpush1.msra.mxu0 0.0
  %1339 = vmatprep.subr.mxu0 0.0
  %1340 = vmatpush1.msra.mxu0 0.0
  %1341 = vmatprep.subr.mxu0 0.0
  %1342 = vmatpush1.msra.mxu0 0.0
  %1343 = vmatprep.subr.mxu0 0.0
  %1344 = vmatpush1.msra.mxu0 0.0
  %1345 = vmatprep.subr.mxu0 0.0
  %1346 = vmatpush1.msra.mxu0 0.0
  %1347 = vmatprep.subr.mxu0 0.0
  %1348 = vmatpush1.msra.mxu0 0.0
  %1349 = vmatprep.subr.mxu0 0.0
  %1350 = vmatpush1.msra.mxu0 0.0
  %1351 = vmatprep.subr.mxu0 0.0
  %1352 = vmatpush1.msra.mxu0 0.0
  %1353 = vmatprep.subr.mxu0 0.0
  %1354 = vmatpush1.msra.mxu0 0.0
  %1355 = vmatprep.subr.mxu0 0.0
  %1356 = vmatpush1.msra.mxu0 0.0
  %1357 = vmatprep.subr.mxu0 0.0
  %1358 = vmatpush1.msra.mxu0 0.0
  %1359 = vmatprep.subr.mxu0 0.0
  %1360 = vmatpush1.msra.mxu0 0.0
  %1361 = vmatprep.subr.mxu0 0.0
  %1362 = vmatpush1.msra.mxu0 0.0
  %1363 = vmatprep.subr.mxu0 0.0
  %1364 = vmatpush1.msra.mxu0 %v102
  %1365 = vmatprep.subr.mxu0 0.0
  %1366 = vmatpush1.msra.mxu0 %v101
  %1367 = vmatprep.subr.mxu0 0.0
  %1368 = vmatpush2.msra.mxu0 0.0
  %1369 = vmatprep.subr.mxu0 0.0
  %1370 = vmatpush2.msra.mxu0 0.0
  %1371 = vmatprep.subr.mxu0 0.0
  %1372 = vmatpush2.msra.mxu0 0.0
  %1373 = vmatprep.subr.mxu0 0.0
  %1374 = vmatpush2.msra.mxu0 0.0
  %1375 = vmatprep.subr.mxu0 0.0
  %1376 = vmatpush2.msra.mxu0 0.0
  %1377 = vmatprep.subr.mxu0 0.0
  %1378 = vmatpush2.msra.mxu0 0.0
  %1379 = vmatprep.subr.mxu0 0.0
  %1380 = vmatpush2.msra.mxu0 0.0
  %1381 = vmatprep.subr.mxu0 0.0
  %1382 = vmatpush2.msra.mxu0 0.0
  %1383 = vmatprep.subr.mxu0 0.0
  %1384 = vmatpush2.msra.mxu0 0.0
  %1385 = vmatprep.subr.mxu0 0.0
  %1386 = vmatpush2.msra.mxu0 0.0
  %1387 = vmatprep.subr.mxu0 0.0
  %1388 = vmatpush2.msra.mxu0 0.0
  %1389 = vmatprep.subr.mxu0 0.0
  %1390 = vmatpush2.msra.mxu0 0.0
  %1391 = vmatprep.subr.mxu0 0.0
  %1392 = vmatpush2.msra.mxu0 0.0
  %1393 = vmatprep.subr.mxu0 0.0
  %1394 = vmatpush2.msra.mxu0 0.0
  %1395 = vmatprep.subr.mxu0 0.0
  %1396 = vmatpush2.msra.mxu0 0.0
  %1397 = vmatprep.subr.mxu0 0.0
  %1398 = vmatpush2.msra.mxu0 0.0
  %1399 = vmatprep.mubr.f32.mxu0 0.0
  %1400 = vmatmul.mubr.f32.gmra.mxu0 %v1333
  %v1401 = vpop.f32.mrf.mxu0
  %v1402 = vadd.f32 %v1257, %v1401
  %v1403 = vpop.f32.mrf.mxu0
  %1404 = vdwg.mxu0
  %v1406 = vsel %vm177, %v1402, 0
  %1408 = vmatprep.subr.mxu0 0.0
  %1409 = vmatpush1.msra.mxu0 0.0
  %1410 = vmatprep.subr.mxu0 0.0
  %1411 = vmatpush1.msra.mxu0 0.0
  %1412 = vmatprep.subr.mxu0 0.0
  %1413 = vmatpush1.msra.mxu0 0.0
  %1414 = vmatprep.subr.mxu0 0.0
  %1415 = vmatpush1.msra.mxu0 0.0
  %1416 = vmatprep.subr.mxu0 0.0
  %1417 = vmatpush1.msra.mxu0 0.0
  %1418 = vmatprep.subr.mxu0 0.0
  %1419 = vmatpush1.msra.mxu0 0.0
  %1420 = vmatprep.subr.mxu0 0.0
  %1421 = vmatpush1.msra.mxu0 0.0
  %1422 = vmatprep.subr.mxu0 0.0
  %1423 = vmatpush1.msra.mxu0 0.0
  %1424 = vmatprep.subr.mxu0 %v100
  %1425 = vmatpush1.msra.mxu0 %v99
  %1426 = vmatprep.subr.mxu0 %v98
  %1427 = vmatpush1.msra.mxu0 %v97
  %1428 = vmatprep.subr.mxu0 %v96
  %1429 = vmatpush1.msra.mxu0 %v95
  %1430 = vmatprep.subr.mxu0 %v94
  %1431 = vmatpush1.msra.mxu0 %v93
  %1432 = vmatprep.subr.mxu0 %v92
  %1433 = vmatpush1.msra.mxu0 %v91
  %1434 = vmatprep.subr.mxu0 %v90
  %1435 = vmatpush1.msra.mxu0 %v89
  %1436 = vmatprep.subr.mxu0 %v88
  %1437 = vmatpush1.msra.mxu0 %v87
  %1438 = vmatprep.subr.mxu0 %v86
  %1439 = vmatpush1.msra.mxu0 %v85
  %1440 = vmatprep.subr.mxu0 0.0
  %1441 = vmatpush2.msra.mxu0 0.0
  %1442 = vmatprep.subr.mxu0 0.0
  %1443 = vmatpush2.msra.mxu0 0.0
  %1444 = vmatprep.subr.mxu0 0.0
  %1445 = vmatpush2.msra.mxu0 0.0
  %1446 = vmatprep.subr.mxu0 0.0
  %1447 = vmatpush2.msra.mxu0 0.0
  %1448 = vmatprep.subr.mxu0 0.0
  %1449 = vmatpush2.msra.mxu0 0.0
  %1450 = vmatprep.subr.mxu0 0.0
  %1451 = vmatpush2.msra.mxu0 0.0
  %1452 = vmatprep.subr.mxu0 0.0
  %1453 = vmatpush2.msra.mxu0 0.0
  %1454 = vmatprep.subr.mxu0 0.0
  %1455 = vmatpush2.msra.mxu0 0.0
  %1456 = vmatprep.subr.mxu0 0.0
  %1457 = vmatpush2.msra.mxu0 0.0
  %1458 = vmatprep.subr.mxu0 0.0
  %1459 = vmatpush2.msra.mxu0 0.0
  %1460 = vmatprep.subr.mxu0 0.0
  %1461 = vmatpush2.msra.mxu0 0.0
  %1462 = vmatprep.subr.mxu0 0.0
  %1463 = vmatpush2.msra.mxu0 0.0
  %1464 = vmatprep.subr.mxu0 0.0
  %1465 = vmatpush2.msra.mxu0 0.0
  %1466 = vmatprep.subr.mxu0 0.0
  %1467 = vmatpush2.msra.mxu0 0.0
  %1468 = vmatprep.subr.mxu0 0.0
  %1469 = vmatpush2.msra.mxu0 0.0
  %1470 = vmatprep.subr.mxu0 0.0
  %1471 = vmatpush2.msra.mxu0 0.0
  %1472 = vmatprep.mubr.f32.mxu0 0.0
  %1473 = vmatmul.mubr.f32.gmra.mxu0 %v1406
  %v1474 = vpop.f32.mrf.mxu0
  %v1475 = vadd.f32 %v1181, %v1474
  %v1476 = vpop.f32.mrf.mxu0
  %v1477 = vadd.f32 %v1182, %v1476
  %1478 = vdwg.mxu0
  %v1479 = vrot.slane %v1475, 4
  %v1480 = vadd.f32 %v1475, %v1479
  %v1481 = vrot.slane %v1480, 2
  %v1482 = vadd.f32 %v1480, %v1481
  %v1483 = vrot.slane %v1482, 1
  %v1484 = vadd.f32 %v1482, %v1483
  %v1485 = vrot.slane %v1477, 4
  %v1486 = vadd.f32 %v1477, %v1485
  %v1487 = vrot.slane %v1486, 2
  %v1488 = vadd.f32 %v1486, %v1487
  %v1489 = vrot.slane %v1488, 1
  %v1490 = vadd.f32 %v1488, %v1489
  %v1491 = vmul.f32 %v1484, 0.125
  %v1492 = vmul.f32 %v1490, 0.125
  %vm1493 = vcmask 1040384
  %v1494 = vsel %vm1493, %v802, %v1491
  %v1495 = vsel %vm1493, %v803, %v1492
  %v1498 = vcombine.low %v1494, %v1495
  %v1500 = vunpack.c.l.s4 1983009808
  %v1501 = vunpack.c.0.s8 %v1500
  %v1502 = vlaneseq
  %v1503 = vshrl.u32 %v1502, 7
  %v1504 = vsub.s32 %v1501, %v1503
  %v1505 = vrot.slane %v1498, %v1504
  %1507 = vst [vmem:[%s11] sm:$0xf] %v1505
  // Predicated region
  $region46: #{ipyramid_flow_forward.1} parent=0 // pred_check
    _
  $region47: #{ipyramid_flow_forward.1} parent=0 // pred_check_branch
    %1509 = sbr.rel (0) target = $region49
  $region48: #{ipyramid_flow_forward.1} parent=0 // pred_region
    _
  $region49: #{ipyramid_flow_forward.1} parent=0 // pred_fallthru
    _
  // Predicated region
  $region50: #{ipyramid_flow_forward.1} parent=0 // pred_check
    _
  $region51: #{ipyramid_flow_forward.1} parent=0 // pred_check_branch
    %1511 = sbr.rel (0) target = $region53
  $region52: #{ipyramid_flow_forward.1} parent=0 // pred_region
    _
  $region53: #{ipyramid_flow_forward.1} parent=0 // pred_fallthru
    _

</llo_original>
